<compile_context>
chip_gen: v5e
topology: v5e:2x2
jax: 0.10.0
libtpu: 0.0.40
codegen_flags: <defaults>
</compile_context>

<pallas_src>
import functools
import math

import jax
import jax.numpy as jnp
from jax.experimental import pallas as pl
from jax.experimental.pallas import tpu as pltpu


def _round_up(x, m):
    return ((x + m - 1) // m) * m


def _cdiv(a, b):
    return -(-a // b)


# ---------------------------------------------------------------------------
# kernels
# ---------------------------------------------------------------------------
def _rope_packed_kernel(pattern_ref, cos_ref, sin_ref, *, positions_per_row):
    """FULL / lane-dense PACKED mode.

    pattern_ref: (2, lanes) f32. row 0 = per-lane inverse frequency, row 1 =
      per-lane position offset inside one output row.
    cos_ref / sin_ref: (block_rows, lanes) output tiles.
    """
    block_rows, lanes = cos_ref.shape
    pat = pattern_ref[...]
    inv_row = pat[0:1, :]                               # (1, lanes)
    pos_row = pat[1:2, :]                               # (1, lanes)
    i = pl.program_id(0)
    base = i * (block_rows * positions_per_row)
    row = jax.lax.broadcasted_iota(jnp.int32, (block_rows, lanes), 0)
    t = (base + row * positions_per_row).astype(jnp.float32) + pos_row
    angle = t * inv_row
    cos_ref[...] = jnp.cos(angle).astype(cos_ref.dtype)
    sin_ref[...] = jnp.sin(angle).astype(sin_ref.dtype)


def _rope_mirror_kernel(pattern_ref, cos_ref, sin_ref):
    """MIRROR mode (dim % 256 == 0): compute one half, two aligned stores."""
    block_rows, lanes = cos_ref.shape
    half = lanes // 2                                   # multiple of 128
    inv_row = pattern_ref[0:1, :]                       # (1, half)
    i = pl.program_id(0)
    base = i * block_rows
    row = jax.lax.broadcasted_iota(jnp.int32, (block_rows, half), 0)
    angle = (base + row).astype(jnp.float32) * inv_row
    c = jnp.cos(angle).astype(cos_ref.dtype)
    s = jnp.sin(angle).astype(sin_ref.dtype)
    # emb = cat(freqs, freqs): duplicate via two 128-lane-aligned stores
    # instead of materializing a concatenated temporary.
    cos_ref[:, 0:half] = c
    cos_ref[:, half:lanes] = c
    sin_ref[:, 0:half] = s
    sin_ref[:, half:lanes] = s


def _rope_packed_half_kernel(pattern_ref, cos_ref, sin_ref):
    """PACKED_HALF mode (dim == 128).

    Each 128-lane compute row holds the 64 half-frequency angles of TWO
    positions (base+r in lanes 0:64, base+R+r in lanes 64:128), so cos/sin run
    once per unique angle.  Output rows (cat(freqs,freqs)) are rebuilt with an
    XLU half-lane rotate + select and stored as two contiguous sublane ranges.
    """
    block_rows, lanes = cos_ref.shape                   # lanes == 128
    half = lanes // 2
    R = block_rows // 2
    inv_row = pattern_ref[0:1, :]                       # (1, 128) = [inv, inv]
    i = pl.program_id(0)
    base = i * block_rows
    row = jax.lax.broadcasted_iota(jnp.int32, (R, lanes), 0)
    lane = jax.lax.broadcasted_iota(jnp.int32, (R, lanes), 1)
    lo = lane < half
    t = base + row + jnp.where(lo, 0, R)
    angle = t.astype(jnp.float32) * inv_row
    c = jnp.cos(angle)
    s = jnp.sin(angle)
    c_sw = pltpu.roll(c, shift=half, axis=1)            # swap lane halves
    s_sw = pltpu.roll(s, shift=half, axis=1)
    cos_ref[0:R, :] = jnp.where(lo, c, c_sw).astype(cos_ref.dtype)
    cos_ref[R:block_rows, :] = jnp.where(lo, c_sw, c).astype(cos_ref.dtype)
    sin_ref[0:R, :] = jnp.where(lo, s, s_sw).astype(sin_ref.dtype)
    sin_ref[R:block_rows, :] = jnp.where(lo, s_sw, s).astype(sin_ref.dtype)


# ---------------------------------------------------------------------------
# cache builder
# ---------------------------------------------------------------------------
def _build_rope_cache(inv_freq_half, dim, seq_len, cache_dtype):
    """Returns (cos_packed, sin_packed, positions_per_row).

    The packed arrays have shape (padded_rows, lanes); row-major they are the
    (positions, dim) cache with positions_per_row positions per row.
    """
    half = dim // 2
    itemsize = jnp.dtype(cache_dtype).itemsize

    # ---- mode / lane layout ------------------------------------------------
    if dim % 256 == 0:
        mode, lanes, P, width = "mirror", dim, 1, half
    elif dim == 128:
        mode, lanes, P, width = "packed_half", 128, 1, 128
    elif dim % 128 == 0:
        mode, lanes, P, width = "full", dim, 1, dim
    else:
        lcm = dim * 128 // math.gcd(dim, 128)
        if lcm <= 1024:
            mode, lanes, P, width = "packed", lcm, lcm // dim, lcm
        else:
            # TODO(synk): pathological head dims fall back to masked stores.
            mode, lanes, P, width = "packed", dim, 1, dim

    # ---- per-lane pattern (2, width): inverse freq + position offset -------
    if mode == "mirror":
        inv_pattern = inv_freq_half
        pos_pattern = jnp.zeros((width,), jnp.float32)
    elif mode == "packed_half":
        inv_pattern = jnp.concatenate([inv_freq_half, inv_freq_half])
        pos_pattern = jnp.zeros((width,), jnp.float32)
    else:
        inv_full = jnp.concatenate([inv_freq_half, inv_freq_half])
        inv_pattern = jnp.tile(inv_full, P) if P > 1 else inv_full
        pos_pattern = (jnp.arange(width, dtype=jnp.int32) // dim
                       ).astype(jnp.float32)
    pattern = jnp.stack([inv_pattern, pos_pattern]).astype(jnp.float32)

    # ---- row tiling ---------------------------------------------------------
    row_align = 8 * max(1, 4 // itemsize)       # sublane packing for <32-bit
    if mode == "packed_half":
        row_align *= 2                          # block splits into two halves
    rows_needed = _cdiv(seq_len, P)
    # <=256 KiB per output block: amortizes the ~0.35us/step overhead while
    # 2 outputs x 2 pipeline buffers stay ~1 MiB (fits every scoped-VMEM
    # default) and intermediates stay small.
    per_block_budget = 256 << 10
    cap = (per_block_budget // (lanes * itemsize)) // row_align * row_align
    cap = max(row_align, min(cap, 1024))
    nblocks = _cdiv(rows_needed, cap)
    if nblocks > 1 and nblocks % 2:
        nblocks += 1                            # even grid for v7x 2-TC split
    block_rows = _round_up(_cdiv(rows_needed, nblocks), row_align)
    nblocks = _cdiv(rows_needed, block_rows)
    if nblocks > 1 and nblocks % 2:
        nblocks += 1
    padded_rows = nblocks * block_rows

    if mode == "mirror":
        kernel = _rope_mirror_kernel
    elif mode == "packed_half":
        kernel = _rope_packed_half_kernel
    else:
        kernel = functools.partial(_rope_packed_kernel, positions_per_row=P)

    cos, sin = pl.pallas_call(
        kernel,
        out_shape=(jax.ShapeDtypeStruct((padded_rows, lanes), cache_dtype),
                   jax.ShapeDtypeStruct((padded_rows, lanes), cache_dtype)),
        grid_spec=pltpu.PrefetchScalarGridSpec(
            num_scalar_prefetch=0,
            grid=(nblocks,),
            in_specs=[pl.BlockSpec((2, width), lambda i: (0, 0))],
            out_specs=(pl.BlockSpec((block_rows, lanes), lambda i: (i, 0)),
                       pl.BlockSpec((block_rows, lanes), lambda i: (i, 0))),
        ),
        compiler_params=pltpu.CompilerParams(
            dimension_semantics=("parallel",)),
    )(pattern)
    return cos, sin, P


# ---------------------------------------------------------------------------
# module
# ---------------------------------------------------------------------------
class MiniCPMRotaryEmbedding:
    """JAX/Pallas port of the PyTorch MiniCPMRotaryEmbedding module."""

    def __init__(self, dim, max_position_embeddings=2048, base=10000,
                 cache_dtype=jnp.float32):
        assert dim % 2 == 0, "rotary dim must be even"
        self.dim = dim
        self.max_position_embeddings = max_position_embeddings
        self.base = base
        self.cache_dtype = jnp.dtype(cache_dtype)
        # inv_freq = 1 / base^(arange(0, dim, 2)/dim)
        self.inv_freq = 1.0 / (base ** (jnp.arange(0, dim, 2,
                                                   dtype=jnp.float32) / dim))
        self._set_cos_sin_cache(seq_len=max_position_embeddings)

    def _set_cos_sin_cache(self, seq_len):
        self.max_seq_len_cached = seq_len
        cos, sin, P = _build_rope_cache(self.inv_freq, self.dim, seq_len,
                                        self.cache_dtype)
        self._cos_packed = cos          # (padded_rows, lanes), lane-dense
        self._sin_packed = sin
        self._positions_per_row = P
        self._views = {}                # (seq_len, dtype) -> (cos, sin) views
        # PyTorch-compatible attributes (already trimmed to seq_len).
        self.cos_cached, self.sin_cached = self._get_view(seq_len,
                                                          self.cache_dtype)

    def _get_view(self, seq_len, dtype):
        """Memoized reshape/slice/cast of the packed cache (one-time HBM pass
        per (seq_len, dtype); subsequent forwards reuse the device arrays)."""
        key = (int(seq_len), jnp.dtype(dtype).name)
        hit = self._views.get(key)
        if hit is None:
            n = self._cos_packed.shape[0] * self._positions_per_row
            cos = self._cos_packed.reshape(n, self.dim)[:seq_len]
            sin = self._sin_packed.reshape(n, self.dim)[:seq_len]
            if cos.dtype != jnp.dtype(dtype):
                cos = cos.astype(dtype)
                sin = sin.astype(dtype)
            hit = (cos, sin)
            self._views[key] = hit
        return hit

    def __call__(self, x, seq_len=None):
        if seq_len is None:
            seq_len = self.max_seq_len_cached
        if seq_len > self.max_seq_len_cached:
            self._set_cos_sin_cache(seq_len=seq_len)
        return self._get_view(seq_len, x.dtype)


# ---------------------------------------------------------------------------
# reference + tests
# ---------------------------------------------------------------------------
def _reference(dim, base, seq_len, dtype):
    inv_freq = 1.0 / (base ** (jnp.arange(0, dim, 2, dtype=jnp.float32) / dim))
    t = jnp.arange(seq_len, dtype=jnp.float32)
    freqs = jnp.outer(t, inv_freq)
    emb = jnp.concatenate([freqs, freqs], axis=-1)
    return jnp.cos(emb).astype(dtype), jnp.sin(emb).astype(dtype)


if __name__ == "__main__":
    key = jax.random.PRNGKey(0)

    # --- case 1: small head_dim (lane-dense packed layout, 4 pos/row) -------
    batch, seq_len, dim = 2, 8, 32
    x = jax.random.normal(key, (batch, seq_len, dim), dtype=jnp.float32)
    rope = MiniCPMRotaryEmbedding(dim=dim, max_position_embeddings=256)
    cos, sin = rope(x, seq_len=seq_len)
    cos = jax.block_until_ready(cos)
    sin = jax.block_until_ready(sin)
    ref_cos, ref_sin = _reference(dim, 10000, seq_len, jnp.float32)
    assert cos.shape == (seq_len, dim) and sin.shape == (seq_len, dim)
    assert cos.dtype == x.dtype and sin.dtype == x.dtype
    assert jnp.allclose(cos, ref_cos, atol=1e-5, rtol=1e-5)
    assert jnp.allclose(sin, ref_sin, atol=1e-5, rtol=1e-5)

    # memoized view: second identical call returns the cached device arrays
    cos_again, _ = rope(x, seq_len=seq_len)
    assert cos_again is cos

    # cache-growth path (seq_len > max_position_embeddings triggers rebuild)
    cos2, sin2 = rope(x, seq_len=300)
    jax.block_until_ready(cos2)
    ref_cos2, ref_sin2 = _reference(dim, 10000, 300, jnp.float32)
    assert cos2.shape == (300, dim) and sin2.shape == (300, dim)
    assert jnp.allclose(cos2, ref_cos2, atol=1e-5, rtol=1e-5)
    assert jnp.allclose(sin2, ref_sin2, atol=1e-5, rtol=1e-5)

    # --- case 2: dim=128 (packed-half EUP halving), bf16 cache ---------------
    dim2 = 128
    xb = jax.random.normal(key, (2, 130, dim2), dtype=jnp.bfloat16)
    rope_bf16 = MiniCPMRotaryEmbedding(dim=dim2, max_position_embeddings=512,
                                       cache_dtype=jnp.bfloat16)
    cos_b, sin_b = rope_bf16(xb, seq_len=130)
    jax.block_until_ready(cos_b)
    ref_cos_b, ref_sin_b = _reference(dim2, 10000, 130, jnp.bfloat16)
    assert cos_b.dtype == jnp.bfloat16 and sin_b.dtype == jnp.bfloat16
    assert jnp.allclose(cos_b.astype(jnp.float32),
                        ref_cos_b.astype(jnp.float32), atol=1e-2, rtol=1e-2)
    assert jnp.allclose(sin_b.astype(jnp.float32),
                        ref_sin_b.astype(jnp.float32), atol=1e-2, rtol=1e-2)

    # --- case 3: dim=256 (mirror mode: two aligned half-width stores) -------
    dim3 = 256
    xc = jax.random.normal(key, (2, 64, dim3), dtype=jnp.float32)
    rope3 = MiniCPMRotaryEmbedding(dim=dim3, max_position_embeddings=512)
    cos_c, sin_c = rope3(xc, seq_len=64)
    jax.block_until_ready(cos_c)
    ref_cos_c, ref_sin_c = _reference(dim3, 10000, 64, jnp.float32)
    assert jnp.allclose(cos_c, ref_cos_c, atol=1e-5, rtol=1e-5)
    assert jnp.allclose(sin_c, ref_sin_c, atol=1e-5, rtol=1e-5)

    print("KERNEL_OK")
</pallas_src>

<mosaic_0001>
module attributes {stable_mosaic.version = 11 : i64} {
  func.func @_rope_packed_kernel(%arg0: i32, %arg1: memref<2x128xf32, #tpu.memory_space<vmem>>, %arg2: memref<64x128xf32, #tpu.memory_space<vmem>>, %arg3: memref<64x128xf32, #tpu.memory_space<vmem>>) attributes {dimension_semantics = [#tpu.dimension_semantics<parallel>], iteration_bounds = array<i64: 1>, scalar_prefetch = 0 : i64, scratch_operands = 0 : i64, tpu.core_type = #tpu.core_type<tc>, window_params = [{pipeline_mode = #tpu.pipeline_mode<synchronous>, transform_indices = @transform_0, window_bounds = array<i64: 2, 128>}, {transform_indices = @transform_1, window_bounds = array<i64: 64, 128>}, {transform_indices = @transform_2, window_bounds = array<i64: 64, 128>}]} {
    %c0 = arith.constant 0 : index
    %c0_0 = arith.constant 0 : index
    %0 = vector.load %arg1[%c0, %c0_0] : memref<2x128xf32, #tpu.memory_space<vmem>>, vector<2x128xf32>
    %1 = vector.extract_strided_slice %0 {offsets = [0, 0], sizes = [1, 128], strides = [1, 1]} : vector<2x128xf32> to vector<1x128xf32>
    %2 = vector.extract_strided_slice %0 {offsets = [1, 0], sizes = [1, 128], strides = [1, 1]} : vector<2x128xf32> to vector<1x128xf32>
    %c256_i32 = arith.constant 256 : i32
    %3 = arith.muli %arg0, %c256_i32 : i32
    %4 = tpu.iota {dimensions = array<i32: 0>} : vector<64x128xi32>
    %c4_i32 = arith.constant 4 : i32
    %5 = vector.broadcast %c4_i32 : i32 to vector<64x128xi32>
    %6 = arith.muli %4, %5 : vector<64x128xi32>
    %7 = vector.broadcast %3 : i32 to vector<64x128xi32>
    %8 = arith.addi %7, %6 : vector<64x128xi32>
    %9 = arith.sitofp %8 : vector<64x128xi32> to vector<64x128xf32>
    %10 = vector.broadcast %2 : vector<1x128xf32> to vector<64x128xf32>
    %11 = arith.addf %9, %10 : vector<64x128xf32>
    %12 = vector.broadcast %1 : vector<1x128xf32> to vector<64x128xf32>
    %13 = arith.mulf %11, %12 : vector<64x128xf32>
    %14 = math.cos %13 : vector<64x128xf32>
    %c0_1 = arith.constant 0 : index
    %c0_2 = arith.constant 0 : index
    %15 = vector.load %arg2[%c0_1, %c0_2] : memref<64x128xf32, #tpu.memory_space<vmem>>, vector<64x128xf32>
    tpu.vector_store %arg2[%c0_1, %c0_2], %14 {strides = array<i32>} : memref<64x128xf32, #tpu.memory_space<vmem>>, vector<64x128xf32>,
    %16 = math.sin %13 : vector<64x128xf32>
    %c0_3 = arith.constant 0 : index
    %c0_4 = arith.constant 0 : index
    %17 = vector.load %arg3[%c0_3, %c0_4] : memref<64x128xf32, #tpu.memory_space<vmem>>, vector<64x128xf32>
    tpu.vector_store %arg3[%c0_3, %c0_4], %16 {strides = array<i32>} : memref<64x128xf32, #tpu.memory_space<vmem>>, vector<64x128xf32>,
    return
  }
  func.func @transform_0(%arg0: i32) -> (i32, i32) {
    %c0_i32 = arith.constant 0 : i32
    %c0_i32_0 = arith.constant 0 : i32
    %c0_i32_1 = arith.constant 0 : i32
    return %c0_i32, %c0_i32_0 : i32, i32
  }
  func.func @transform_1(%arg0: i32) -> (i32, i32) {
    %c0_i32 = arith.constant 0 : i32
    %c0_i32_0 = arith.constant 0 : i32
    return %arg0, %c0_i32 : i32, i32
  }
  func.func @transform_2(%arg0: i32) -> (i32, i32) {
    %c0_i32 = arith.constant 0 : i32
    %c0_i32_0 = arith.constant 0 : i32
    return %arg0, %c0_i32 : i32, i32
  }
}

</mosaic_0001>

<llo_original>
// kernel: tpu_custom_call.1
$region0: #{tpu_custom_call.1}
  #allocation0 [shape = 'u32[]', space=smem, size = 0x4, offset = 0x4, fixed_abs, tag = 'smem constant byte address 0x4 - core index']
  #allocation1 [shape = 'u32[72,128]{1,0:T(1,128)}', space=vmem, size = 0x9000, scoped, tag = 'internal scratch']
  %s0 = inlined_call_operand.hbm [shape: f32[2,128], index: 0, kind: input, shape index: {}]
  %s1 = inlined_call_operand.hbm [shape: f32[64,128], index: 1, kind: output, shape index: {0}]
  %s2 = inlined_call_operand.hbm [shape: f32[64,128], index: 2, kind: output, shape index: {1}]
  %3 = xla_tuple %s1, %s2
  %s4 = sld [smem:[#allocation0]]
  $region26: #{tpu_custom_call.1} parent=0
    _
  %s6 = ssub.s32 1, %s4
  %s7 = scalar_select 0, %s6, %s4
  $region1: #{tpu_custom_call.1} parent=0
    #allocation2 [shape = 'u8[1024]{0}', space=vmem, size = 0x400, scoped, tag = 'input window, operand 0, single buffered']
    #allocation3 [shape = 's32[1]{0}', space=sflag, size = 0x4, scoped, tag = 'scoped memory for tpu_custom_call.1']
    #allocation4 [shape = 's32[1]{0}', space=sflag, size = 0x4, scoped, tag = 'scoped memory for tpu_custom_call.1']
    #allocation5 [shape = 'u8[32768]{0}', space=vmem, size = 0x8000, scoped, tag = 'output window, operand 0, single buffered']
    #allocation6 [shape = 'u8[32768]{0}', space=vmem, size = 0x8000, scoped, tag = 'output window, operand 1, single buffered']
    #allocation7 [shape = 's32[1]{0}', space=sflag, size = 0x4, scoped, tag = 'scoped memory for tpu_custom_call.1']
    %8 = vsyncpa [#allocation3], 0
    %9 = vsyncpa [#allocation4], 0
    %10 = vsyncpa [#allocation7], 0
    // Predicated region
    $region2: #{tpu_custom_call.1} parent=1 // pred_check
      _
    $region3: #{tpu_custom_call.1} parent=1 // pred_check_branch
      %12 = sbr.rel (0) target = $region5
    $region4: #{tpu_custom_call.1} parent=1 // pred_region
      %14 = vsyncadd [#allocation3], 0
      %s16 = sshll.u32 %s0, 4
      %s17 = int_to_ptr.hbm [resolvable:$true] %s16
      %s18 = sshll.u32 [#allocation2], 4
      %s19 = int_to_ptr.vmem [resolvable:$true] %s18
      %21 = dma.hbm_to_vmem [thread:$0]  %s17, 32, %s19, [#allocation3]
    $region5: #{tpu_custom_call.1} parent=1 // pred_fallthru
      _
    // Predicated region
    $region6: #{tpu_custom_call.1} parent=1 // pred_check
      _
    $region7: #{tpu_custom_call.1} parent=1 // pred_check_branch
      %23 = sbr.rel (0) target = $region9
    $region8: #{tpu_custom_call.1} parent=1 // pred_region
      %25 = dma.done [#allocation3], 32
    $region9: #{tpu_custom_call.1} parent=1 // pred_fallthru
      _
    %v26 = vld [vmem:[#allocation2] sm:$0x3]
    %s27 = smul.u32 0, 256
    %v28 = vlaneseq
    %v29 = vshrl.u32 %v28, 7
    %v30 = vadd.s32 %v29, 8
    %v31 = vadd.s32 %v29, 16
    %v32 = vadd.s32 %v29, 24
    %v33 = vadd.s32 %v29, 32
    %v34 = vadd.s32 %v29, 40
    %v35 = vadd.s32 %v29, 48
    %v36 = vadd.s32 %v29, 56
    %v37 = vmul.u32 %v29, 4
    %v38 = vmul.u32 %v30, 4
    %v39 = vmul.u32 %v31, 4
    %v40 = vmul.u32 %v32, 4
    %v41 = vmul.u32 %v33, 4
    %v42 = vmul.u32 %v34, 4
    %v43 = vmul.u32 %v35, 4
    %v44 = vmul.u32 %v36, 4
    %v45 = vstv %s27
    %v46 = vadd.s32 %v45, %v37
    %v47 = vadd.s32 %v45, %v38
    %v48 = vadd.s32 %v45, %v39
    %v49 = vadd.s32 %v45, %v40
    %v50 = vadd.s32 %v45, %v41
    %v51 = vadd.s32 %v45, %v42
    %v52 = vadd.s32 %v45, %v43
    %v53 = vadd.s32 %v45, %v44
    %v54 = vcvt.s32.f32 %v46
    %v55 = vcvt.s32.f32 %v47
    %v56 = vcvt.s32.f32 %v48
    %v57 = vcvt.s32.f32 %v49
    %v58 = vcvt.s32.f32 %v50
    %v59 = vcvt.s32.f32 %v51
    %v60 = vcvt.s32.f32 %v52
    %v61 = vcvt.s32.f32 %v53
    %v62 = vperm.slane %v26, 1
    %v63 = vadd.f32 %v54, %v62
    %v64 = vadd.f32 %v55, %v62
    %v65 = vadd.f32 %v56, %v62
    %v66 = vadd.f32 %v57, %v62
    %v67 = vadd.f32 %v58, %v62
    %v68 = vadd.f32 %v59, %v62
    %v69 = vadd.f32 %v60, %v62
    %v70 = vadd.f32 %v61, %v62
    %v71 = vperm.slane %v26, 0
    %v72 = vmul.f32 %v63, %v71
    %v73 = vmul.f32 %v64, %v71
    %v74 = vmul.f32 %v65, %v71
    %v75 = vmul.f32 %v66, %v71
    %v76 = vmul.f32 %v67, %v71
    %v77 = vmul.f32 %v68, %v71
    %v78 = vmul.f32 %v69, %v71
    %v79 = vmul.f32 %v70, %v71
    %v80 = vand.u32 2147483647, %v72
    %vm81 = vcmp.le.f32.partialorder %v80, 0.7853982
    %vm82 = vcmp.lt.s32.totalorder %v72, 0
    %v83 = vand.u32 %v72, 2139095040
    %v84 = vshrl.u32 %v83, 23
    %v85 = vsub.s32 %v84, 127
    %v86 = vand.u32 2147483647, %v72
    %v87 = vand.u32 %v86, 8388607
    %v88 = vor.u32 %v87, 8388608
    %v89 = vsub.s32 0, %v88
    %v90 = vadd.s32 %v85, 1
    %vm91 = vcmp.gt.s32.totalorder %v90, 0
    %v92 = vsel %vm91, %v90, 0
    %v93 = vshrl.u32 %v92, 5
    %v94 = vand.u32 %v92, 31
    %v95 = vsub.s32 32, %v94
    %v96 = vshrl.u32 683565275, %v95
    %v97 = vshll.u32 683565275, %v94
    %v98 = vshrl.u32 2475754826, %v95
    %v99 = vor.u32 %v97, %v98
    %v100 = vshll.u32 2475754826, %v94
    %v101 = vshrl.u32 2131351028, %v95
    %v102 = vor.u32 %v100, %v101
    %v103 = vshll.u32 2131351028, %v94
    %v104 = vshrl.u32 2102212464, %v95
    %v105 = vor.u32 %v103, %v104
    %v106 = vshll.u32 2102212464, %v94
    %v107 = vshrl.u32 920167782, %v95
    %v108 = vor.u32 %v106, %v107
    %v109 = vshll.u32 920167782, %v94
    %v110 = vshrl.u32 1326507024, %v95
    %v111 = vor.u32 %v109, %v110
    %vm112 = vcmp.lt.s32.totalorder %v93, 1
    %vm113 = vcmp.lt.s32.totalorder %v93, 2
    %vm114 = vcmp.lt.s32.totalorder %v93, 3
    %vm115 = vcmp.lt.s32.totalorder %v93, 4
    %v116 = vsel %vm112, %v96, %v99
    %v117 = vsel %vm115, %v105, 2102212464
    %v118 = vsel %vm114, %v102, %v117
    %v119 = vsel %vm113, %v116, %v118
    %v120 = vsel %vm112, %v99, %v102
    %v121 = vsel %vm115, %v108, 920167782
    %v122 = vsel %vm114, %v105, %v121
    %v123 = vsel %vm113, %v120, %v122
    %v124 = vsel %vm112, %v102, %v105
    %v125 = vsel %vm115, %v111, 1326507024
    %v126 = vsel %vm114, %v108, %v125
    %v127 = vsel %vm113, %v124, %v126
    %v128 = vshll.u32 %v88, 8
    %v129 = vand.u32 %v128, 65535
    %v130 = vshrl.u32 %v128, 16
    %v131 = vand.u32 %v127, 65535
    %v132 = vshrl.u32 %v127, 16
    %v133 = vmul.u32 %v129, %v131
    %v134 = vmul.u32 %v129, %v132
    %v135 = vmul.u32 %v130, %v131
    %v136 = vmul.u32 %v130, %v132
    %v137 = vshll.u32 %v134, 16
    %v138 = vshrl.u32 %v134, 16
    %v139 = vshll.u32 %v135, 16
    %v140 = vshrl.u32 %v135, 16
    %vm141 = vc.u32 %v133, %v137
    %v142 = vsel %vm141, 1, 0
    %v143 = vadd.s32 %v133, %v137
    %v144 = vadd.s32 %v136, %v142
    %vm145 = vc.u32 %v143, %v139
    %v146 = vsel %vm145, 1, 0
    %v147 = vadd.s32 %v143, %v139
    %v148 = vadd.s32 %v144, %v146
    %v149 = vadd.s32 %v148, %v138
    %v150 = vadd.s32 %v149, %v140
    %v151 = vand.u32 %v128, 65535
    %v152 = vshrl.u32 %v128, 16
    %v153 = vand.u32 %v123, 65535
    %v154 = vshrl.u32 %v123, 16
    %v155 = vmul.u32 %v151, %v153
    %v156 = vmul.u32 %v151, %v154
    %v157 = vmul.u32 %v152, %v153
    %v158 = vmul.u32 %v152, %v154
    %v159 = vshll.u32 %v156, 16
    %v160 = vshrl.u32 %v156, 16
    %v161 = vshll.u32 %v157, 16
    %v162 = vshrl.u32 %v157, 16
    %vm163 = vc.u32 %v155, %v159
    %v164 = vsel %vm163, 1, 0
    %v165 = vadd.s32 %v155, %v159
    %v166 = vadd.s32 %v158, %v164
    %vm167 = vc.u32 %v165, %v161
    %v168 = vsel %vm167, 1, 0
    %v169 = vadd.s32 %v165, %v161
    %v170 = vadd.s32 %v166, %v168
    %v171 = vadd.s32 %v170, %v160
    %v172 = vadd.s32 %v171, %v162
    %v173 = vmul.u32 %v128, %v119
    %v174 = vadd.s32 %v150, %v169
    %vm175 = vc.u32 %v150, %v169
    %v176 = vadd.s32 %v172, 1
    %v177 = vsel %vm175, %v176, %v172
    %v178 = vadd.s32 %v173, %v177
    %v179 = vadd.s32 %v178, 536870912
    %v180 = vshrl.u32 %v179, 30
    %v181 = vshll.u32 %v180, 30
    %v182 = vsub.s32 %v178, %v181
    %vm183 = vcmp.lt.s32.totalorder %v182, 0
    %v184 = vsub.s32 0, %v182
    %v185 = vsel %vm183, %v184, %v182
    %v186 = vclz %v185
    %v187 = vsub.s32 %v186, 2
    %vm188 = vcmp.gt.s32.totalorder 0, %v187
    %v189 = vsel %vm188, 0, %v187
    %v190 = vsub.s32 32, %v189
    %v191 = vshll.u32 %v182, %v189
    %v192 = vshrl.u32 %v174, %v190
    %v193 = vor.u32 %v191, %v192
    %v194 = vsub.s32 4294967266, %v189
    %v195 = vadd.s32 %v194, 127
    %v196 = vshll.u32 %v195, 23
    %v197 = vor.u32 4788187, %v196
    %v198 = vand.u32 2147483647, %v197
    %v200 = vcvt.s32.f32 %v193
    %v201 = vmul.f32 %v200, %v198
    %v202 = vxor.u32 %v201, 2147483648
    %v203 = vsel %vm82, %v202, %v201
    %v204 = vsub.s32 4, %v180
    %v205 = vsel %vm82, %v204, %v180
    %v206 = vsel %vm81, %v72, %v203
    %v207 = vsel %vm81, 0, %v205
    %v208 = vmul.f32 %v206, %v206
    %v209 = vmul.f32 %v208, -0.001358992
    %v210 = vadd.f32 %v209, 0.041655596
    %v211 = vmul.f32 %v208, %v210
    %v212 = vadd.f32 %v211, -0.4999988
    %v213 = vmul.f32 %v208, %v212
    %v214 = vadd.f32 1.0, %v213
    %v215 = vmul.f32 %v206, %v206
    %v216 = vmul.f32 %v215, -0.00019511016
    %v217 = vadd.f32 %v216, 0.008332121
    %v218 = vmul.f32 %v215, %v217
    %v219 = vadd.f32 %v218, -0.16666654
    %v220 = vmul.f32 %v215, %v219
    %v221 = vadd.f32 %v220, 1.0
    %v222 = vmul.f32 %v221, %v206
    %vm223 = vweird.f32 %v72
    %v224 = vand.u32 %v207, 3
    %vm225 = vcmp.lt.s32.totalorder %v224, 2
    %vm226 = vcmp.eq.s32.totalorder %v224, 0
    %v227 = vxor.u32 %v222, 2147483648
    %v228 = vsel %vm226, %v214, %v227
    %vm229 = vcmp.eq.s32.totalorder %v224, 2
    %v230 = vxor.u32 %v214, 2147483648
    %v231 = vsel %vm229, %v230, %v222
    %v232 = vsel %vm225, %v228, %v231
    %v233 = vsel %vm223, nan, %v232
    %v234 = vand.u32 2147483647, %v73
    %vm235 = vcmp.le.f32.partialorder %v234, 0.7853982
    %vm236 = vcmp.lt.s32.totalorder %v73, 0
    %v237 = vand.u32 %v73, 2139095040
    %v238 = vshrl.u32 %v237, 23
    %v239 = vsub.s32 %v238, 127
    %v240 = vand.u32 2147483647, %v73
    %v241 = vand.u32 %v240, 8388607
    %v242 = vor.u32 %v241, 8388608
    %v243 = vsub.s32 0, %v242
    %v244 = vadd.s32 %v239, 1
    %vm245 = vcmp.gt.s32.totalorder %v244, 0
    %v246 = vsel %vm245, %v244, 0
    %v247 = vshrl.u32 %v246, 5
    %v248 = vand.u32 %v246, 31
    %v249 = vsub.s32 32, %v248
    %v250 = vshrl.u32 683565275, %v249
    %v251 = vshll.u32 683565275, %v248
    %v252 = vshrl.u32 2475754826, %v249
    %v253 = vor.u32 %v251, %v252
    %v254 = vshll.u32 2475754826, %v248
    %v255 = vshrl.u32 2131351028, %v249
    %v256 = vor.u32 %v254, %v255
    %v257 = vshll.u32 2131351028, %v248
    %v258 = vshrl.u32 2102212464, %v249
    %v259 = vor.u32 %v257, %v258
    %v260 = vshll.u32 2102212464, %v248
    %v261 = vshrl.u32 920167782, %v249
    %v262 = vor.u32 %v260, %v261
    %v263 = vshll.u32 920167782, %v248
    %v264 = vshrl.u32 1326507024, %v249
    %v265 = vor.u32 %v263, %v264
    %vm266 = vcmp.lt.s32.totalorder %v247, 1
    %vm267 = vcmp.lt.s32.totalorder %v247, 2
    %vm268 = vcmp.lt.s32.totalorder %v247, 3
    %vm269 = vcmp.lt.s32.totalorder %v247, 4
    %v270 = vsel %vm266, %v250, %v253
    %v271 = vsel %vm269, %v259, 2102212464
    %v272 = vsel %vm268, %v256, %v271
    %v273 = vsel %vm267, %v270, %v272
    %v274 = vsel %vm266, %v253, %v256
    %v275 = vsel %vm269, %v262, 920167782
    %v276 = vsel %vm268, %v259, %v275
    %v277 = vsel %vm267, %v274, %v276
    %v278 = vsel %vm266, %v256, %v259
    %v279 = vsel %vm269, %v265, 1326507024
    %v280 = vsel %vm268, %v262, %v279
    %v281 = vsel %vm267, %v278, %v280
    %v282 = vshll.u32 %v242, 8
    %v283 = vand.u32 %v282, 65535
    %v284 = vshrl.u32 %v282, 16
    %v285 = vand.u32 %v281, 65535
    %v286 = vshrl.u32 %v281, 16
    %v287 = vmul.u32 %v283, %v285
    %v288 = vmul.u32 %v283, %v286
    %v289 = vmul.u32 %v284, %v285
    %v290 = vmul.u32 %v284, %v286
    %v291 = vshll.u32 %v288, 16
    %v292 = vshrl.u32 %v288, 16
    %v293 = vshll.u32 %v289, 16
    %v294 = vshrl.u32 %v289, 16
    %vm295 = vc.u32 %v287, %v291
    %v296 = vsel %vm295, 1, 0
    %v297 = vadd.s32 %v287, %v291
    %v298 = vadd.s32 %v290, %v296
    %vm299 = vc.u32 %v297, %v293
    %v300 = vsel %vm299, 1, 0
    %v301 = vadd.s32 %v297, %v293
    %v302 = vadd.s32 %v298, %v300
    %v303 = vadd.s32 %v302, %v292
    %v304 = vadd.s32 %v303, %v294
    %v305 = vand.u32 %v282, 65535
    %v306 = vshrl.u32 %v282, 16
    %v307 = vand.u32 %v277, 65535
    %v308 = vshrl.u32 %v277, 16
    %v309 = vmul.u32 %v305, %v307
    %v310 = vmul.u32 %v305, %v308
    %v311 = vmul.u32 %v306, %v307
    %v312 = vmul.u32 %v306, %v308
    %v313 = vshll.u32 %v310, 16
    %v314 = vshrl.u32 %v310, 16
    %v315 = vshll.u32 %v311, 16
    %v316 = vshrl.u32 %v311, 16
    %vm317 = vc.u32 %v309, %v313
    %v318 = vsel %vm317, 1, 0
    %v319 = vadd.s32 %v309, %v313
    %v320 = vadd.s32 %v312, %v318
    %vm321 = vc.u32 %v319, %v315
    %v322 = vsel %vm321, 1, 0
    %v323 = vadd.s32 %v319, %v315
    %v324 = vadd.s32 %v320, %v322
    %v325 = vadd.s32 %v324, %v314
    %v326 = vadd.s32 %v325, %v316
    %v327 = vmul.u32 %v282, %v273
    %v328 = vadd.s32 %v304, %v323
    %vm329 = vc.u32 %v304, %v323
    %v330 = vadd.s32 %v326, 1
    %v331 = vsel %vm329, %v330, %v326
    %v332 = vadd.s32 %v327, %v331
    %v333 = vadd.s32 %v332, 536870912
    %v334 = vshrl.u32 %v333, 30
    %v335 = vshll.u32 %v334, 30
    %v336 = vsub.s32 %v332, %v335
    %vm337 = vcmp.lt.s32.totalorder %v336, 0
    %v338 = vsub.s32 0, %v336
    %v339 = vsel %vm337, %v338, %v336
    %v340 = vclz %v339
    %v341 = vsub.s32 %v340, 2
    %vm342 = vcmp.gt.s32.totalorder 0, %v341
    %v343 = vsel %vm342, 0, %v341
    %v344 = vsub.s32 32, %v343
    %v345 = vshll.u32 %v336, %v343
    %v346 = vshrl.u32 %v328, %v344
    %v347 = vor.u32 %v345, %v346
    %v348 = vsub.s32 4294967266, %v343
    %v349 = vadd.s32 %v348, 127
    %v350 = vshll.u32 %v349, 23
    %v351 = vor.u32 4788187, %v350
    %v352 = vand.u32 2147483647, %v351
    %v354 = vcvt.s32.f32 %v347
    %v355 = vmul.f32 %v354, %v352
    %v356 = vxor.u32 %v355, 2147483648
    %v357 = vsel %vm236, %v356, %v355
    %v358 = vsub.s32 4, %v334
    %v359 = vsel %vm236, %v358, %v334
    %v360 = vsel %vm235, %v73, %v357
    %v361 = vsel %vm235, 0, %v359
    %v362 = vmul.f32 %v360, %v360
    %v363 = vmul.f32 %v362, -0.001358992
    %v364 = vadd.f32 %v363, 0.041655596
    %v365 = vmul.f32 %v362, %v364
    %v366 = vadd.f32 %v365, -0.4999988
    %v367 = vmul.f32 %v362, %v366
    %v368 = vadd.f32 1.0, %v367
    %v369 = vmul.f32 %v360, %v360
    %v370 = vmul.f32 %v369, -0.00019511016
    %v371 = vadd.f32 %v370, 0.008332121
    %v372 = vmul.f32 %v369, %v371
    %v373 = vadd.f32 %v372, -0.16666654
    %v374 = vmul.f32 %v369, %v373
    %v375 = vadd.f32 %v374, 1.0
    %v376 = vmul.f32 %v375, %v360
    %vm377 = vweird.f32 %v73
    %v378 = vand.u32 %v361, 3
    %vm379 = vcmp.lt.s32.totalorder %v378, 2
    %vm380 = vcmp.eq.s32.totalorder %v378, 0
    %v381 = vxor.u32 %v376, 2147483648
    %v382 = vsel %vm380, %v368, %v381
    %vm383 = vcmp.eq.s32.totalorder %v378, 2
    %v384 = vxor.u32 %v368, 2147483648
    %v385 = vsel %vm383, %v384, %v376
    %v386 = vsel %vm379, %v382, %v385
    %v387 = vsel %vm377, nan, %v386
    %v388 = vand.u32 2147483647, %v74
    %vm389 = vcmp.le.f32.partialorder %v388, 0.7853982
    %vm390 = vcmp.lt.s32.totalorder %v74, 0
    %v391 = vand.u32 %v74, 2139095040
    %v392 = vshrl.u32 %v391, 23
    %v393 = vsub.s32 %v392, 127
    %v394 = vand.u32 2147483647, %v74
    %v395 = vand.u32 %v394, 8388607
    %v396 = vor.u32 %v395, 8388608
    %v397 = vsub.s32 0, %v396
    %v398 = vadd.s32 %v393, 1
    %vm399 = vcmp.gt.s32.totalorder %v398, 0
    %v400 = vsel %vm399, %v398, 0
    %v401 = vshrl.u32 %v400, 5
    %v402 = vand.u32 %v400, 31
    %v403 = vsub.s32 32, %v402
    %v404 = vshrl.u32 683565275, %v403
    %v405 = vshll.u32 683565275, %v402
    %v406 = vshrl.u32 2475754826, %v403
    %v407 = vor.u32 %v405, %v406
    %v408 = vshll.u32 2475754826, %v402
    %v409 = vshrl.u32 2131351028, %v403
    %v410 = vor.u32 %v408, %v409
    %v411 = vshll.u32 2131351028, %v402
    %v412 = vshrl.u32 2102212464, %v403
    %v413 = vor.u32 %v411, %v412
    %v414 = vshll.u32 2102212464, %v402
    %v415 = vshrl.u32 920167782, %v403
    %v416 = vor.u32 %v414, %v415
    %v417 = vshll.u32 920167782, %v402
    %v418 = vshrl.u32 1326507024, %v403
    %v419 = vor.u32 %v417, %v418
    %vm420 = vcmp.lt.s32.totalorder %v401, 1
    %vm421 = vcmp.lt.s32.totalorder %v401, 2
    %vm422 = vcmp.lt.s32.totalorder %v401, 3
    %vm423 = vcmp.lt.s32.totalorder %v401, 4
    %v424 = vsel %vm420, %v404, %v407
    %v425 = vsel %vm423, %v413, 2102212464
    %v426 = vsel %vm422, %v410, %v425
    %v427 = vsel %vm421, %v424, %v426
    %v428 = vsel %vm420, %v407, %v410
    %v429 = vsel %vm423, %v416, 920167782
    %v430 = vsel %vm422, %v413, %v429
    %v431 = vsel %vm421, %v428, %v430
    %v432 = vsel %vm420, %v410, %v413
    %v433 = vsel %vm423, %v419, 1326507024
    %v434 = vsel %vm422, %v416, %v433
    %v435 = vsel %vm421, %v432, %v434
    %v436 = vshll.u32 %v396, 8
    %v437 = vand.u32 %v436, 65535
    %v438 = vshrl.u32 %v436, 16
    %v439 = vand.u32 %v435, 65535
    %v440 = vshrl.u32 %v435, 16
    %v441 = vmul.u32 %v437, %v439
    %v442 = vmul.u32 %v437, %v440
    %v443 = vmul.u32 %v438, %v439
    %v444 = vmul.u32 %v438, %v440
    %v445 = vshll.u32 %v442, 16
    %v446 = vshrl.u32 %v442, 16
    %v447 = vshll.u32 %v443, 16
    %v448 = vshrl.u32 %v443, 16
    %vm449 = vc.u32 %v441, %v445
    %v450 = vsel %vm449, 1, 0
    %v451 = vadd.s32 %v441, %v445
    %v452 = vadd.s32 %v444, %v450
    %vm453 = vc.u32 %v451, %v447
    %v454 = vsel %vm453, 1, 0
    %v455 = vadd.s32 %v451, %v447
    %v456 = vadd.s32 %v452, %v454
    %v457 = vadd.s32 %v456, %v446
    %v458 = vadd.s32 %v457, %v448
    %v459 = vand.u32 %v436, 65535
    %v460 = vshrl.u32 %v436, 16
    %v461 = vand.u32 %v431, 65535
    %v462 = vshrl.u32 %v431, 16
    %v463 = vmul.u32 %v459, %v461
    %v464 = vmul.u32 %v459, %v462
    %v465 = vmul.u32 %v460, %v461
    %v466 = vmul.u32 %v460, %v462
    %v467 = vshll.u32 %v464, 16
    %v468 = vshrl.u32 %v464, 16
    %v469 = vshll.u32 %v465, 16
    %v470 = vshrl.u32 %v465, 16
    %vm471 = vc.u32 %v463, %v467
    %v472 = vsel %vm471, 1, 0
    %v473 = vadd.s32 %v463, %v467
    %v474 = vadd.s32 %v466, %v472
    %vm475 = vc.u32 %v473, %v469
    %v476 = vsel %vm475, 1, 0
    %v477 = vadd.s32 %v473, %v469
    %v478 = vadd.s32 %v474, %v476
    %v479 = vadd.s32 %v478, %v468
    %v480 = vadd.s32 %v479, %v470
    %v481 = vmul.u32 %v436, %v427
    %v482 = vadd.s32 %v458, %v477
    %vm483 = vc.u32 %v458, %v477
    %v484 = vadd.s32 %v480, 1
    %v485 = vsel %vm483, %v484, %v480
    %v486 = vadd.s32 %v481, %v485
    %v487 = vadd.s32 %v486, 536870912
    %v488 = vshrl.u32 %v487, 30
    %v489 = vshll.u32 %v488, 30
    %v490 = vsub.s32 %v486, %v489
    %vm491 = vcmp.lt.s32.totalorder %v490, 0
    %v492 = vsub.s32 0, %v490
    %v493 = vsel %vm491, %v492, %v490
    %v494 = vclz %v493
    %v495 = vsub.s32 %v494, 2
    %vm496 = vcmp.gt.s32.totalorder 0, %v495
    %v497 = vsel %vm496, 0, %v495
    %v498 = vsub.s32 32, %v497
    %v499 = vshll.u32 %v490, %v497
    %v500 = vshrl.u32 %v482, %v498
    %v501 = vor.u32 %v499, %v500
    %v502 = vsub.s32 4294967266, %v497
    %v503 = vadd.s32 %v502, 127
    %v504 = vshll.u32 %v503, 23
    %v505 = vor.u32 4788187, %v504
    %v506 = vand.u32 2147483647, %v505
    %v508 = vcvt.s32.f32 %v501
    %v509 = vmul.f32 %v508, %v506
    %v510 = vxor.u32 %v509, 2147483648
    %v511 = vsel %vm390, %v510, %v509
    %v512 = vsub.s32 4, %v488
    %v513 = vsel %vm390, %v512, %v488
    %v514 = vsel %vm389, %v74, %v511
    %v515 = vsel %vm389, 0, %v513
    %v516 = vmul.f32 %v514, %v514
    %v517 = vmul.f32 %v516, -0.001358992
    %v518 = vadd.f32 %v517, 0.041655596
    %v519 = vmul.f32 %v516, %v518
    %v520 = vadd.f32 %v519, -0.4999988
    %v521 = vmul.f32 %v516, %v520
    %v522 = vadd.f32 1.0, %v521
    %v523 = vmul.f32 %v514, %v514
    %v524 = vmul.f32 %v523, -0.00019511016
    %v525 = vadd.f32 %v524, 0.008332121
    %v526 = vmul.f32 %v523, %v525
    %v527 = vadd.f32 %v526, -0.16666654
    %v528 = vmul.f32 %v523, %v527
    %v529 = vadd.f32 %v528, 1.0
    %v530 = vmul.f32 %v529, %v514
    %vm531 = vweird.f32 %v74
    %v532 = vand.u32 %v515, 3
    %vm533 = vcmp.lt.s32.totalorder %v532, 2
    %vm534 = vcmp.eq.s32.totalorder %v532, 0
    %v535 = vxor.u32 %v530, 2147483648
    %v536 = vsel %vm534, %v522, %v535
    %vm537 = vcmp.eq.s32.totalorder %v532, 2
    %v538 = vxor.u32 %v522, 2147483648
    %v539 = vsel %vm537, %v538, %v530
    %v540 = vsel %vm533, %v536, %v539
    %v541 = vsel %vm531, nan, %v540
    %v542 = vand.u32 2147483647, %v75
    %vm543 = vcmp.le.f32.partialorder %v542, 0.7853982
    %vm544 = vcmp.lt.s32.totalorder %v75, 0
    %v545 = vand.u32 %v75, 2139095040
    %v546 = vshrl.u32 %v545, 23
    %v547 = vsub.s32 %v546, 127
    %v548 = vand.u32 2147483647, %v75
    %v549 = vand.u32 %v548, 8388607
    %v550 = vor.u32 %v549, 8388608
    %v551 = vsub.s32 0, %v550
    %v552 = vadd.s32 %v547, 1
    %vm553 = vcmp.gt.s32.totalorder %v552, 0
    %v554 = vsel %vm553, %v552, 0
    %v555 = vshrl.u32 %v554, 5
    %v556 = vand.u32 %v554, 31
    %v557 = vsub.s32 32, %v556
    %v558 = vshrl.u32 683565275, %v557
    %v559 = vshll.u32 683565275, %v556
    %v560 = vshrl.u32 2475754826, %v557
    %v561 = vor.u32 %v559, %v560
    %v562 = vshll.u32 2475754826, %v556
    %v563 = vshrl.u32 2131351028, %v557
    %v564 = vor.u32 %v562, %v563
    %v565 = vshll.u32 2131351028, %v556
    %v566 = vshrl.u32 2102212464, %v557
    %v567 = vor.u32 %v565, %v566
    %v568 = vshll.u32 2102212464, %v556
    %v569 = vshrl.u32 920167782, %v557
    %v570 = vor.u32 %v568, %v569
    %v571 = vshll.u32 920167782, %v556
    %v572 = vshrl.u32 1326507024, %v557
    %v573 = vor.u32 %v571, %v572
    %vm574 = vcmp.lt.s32.totalorder %v555, 1
    %vm575 = vcmp.lt.s32.totalorder %v555, 2
    %vm576 = vcmp.lt.s32.totalorder %v555, 3
    %vm577 = vcmp.lt.s32.totalorder %v555, 4
    %v578 = vsel %vm574, %v558, %v561
    %v579 = vsel %vm577, %v567, 2102212464
    %v580 = vsel %vm576, %v564, %v579
    %v581 = vsel %vm575, %v578, %v580
    %v582 = vsel %vm574, %v561, %v564
    %v583 = vsel %vm577, %v570, 920167782
    %v584 = vsel %vm576, %v567, %v583
    %v585 = vsel %vm575, %v582, %v584
    %v586 = vsel %vm574, %v564, %v567
    %v587 = vsel %vm577, %v573, 1326507024
    %v588 = vsel %vm576, %v570, %v587
    %v589 = vsel %vm575, %v586, %v588
    %v590 = vshll.u32 %v550, 8
    %v591 = vand.u32 %v590, 65535
    %v592 = vshrl.u32 %v590, 16
    %v593 = vand.u32 %v589, 65535
    %v594 = vshrl.u32 %v589, 16
    %v595 = vmul.u32 %v591, %v593
    %v596 = vmul.u32 %v591, %v594
    %v597 = vmul.u32 %v592, %v593
    %v598 = vmul.u32 %v592, %v594
    %v599 = vshll.u32 %v596, 16
    %v600 = vshrl.u32 %v596, 16
    %v601 = vshll.u32 %v597, 16
    %v602 = vshrl.u32 %v597, 16
    %vm603 = vc.u32 %v595, %v599
    %v604 = vsel %vm603, 1, 0
    %v605 = vadd.s32 %v595, %v599
    %v606 = vadd.s32 %v598, %v604
    %vm607 = vc.u32 %v605, %v601
    %v608 = vsel %vm607, 1, 0
    %v609 = vadd.s32 %v605, %v601
    %v610 = vadd.s32 %v606, %v608
    %v611 = vadd.s32 %v610, %v600
    %v612 = vadd.s32 %v611, %v602
    %v613 = vand.u32 %v590, 65535
    %v614 = vshrl.u32 %v590, 16
    %v615 = vand.u32 %v585, 65535
    %v616 = vshrl.u32 %v585, 16
    %v617 = vmul.u32 %v613, %v615
    %v618 = vmul.u32 %v613, %v616
    %v619 = vmul.u32 %v614, %v615
    %v620 = vmul.u32 %v614, %v616
    %v621 = vshll.u32 %v618, 16
    %v622 = vshrl.u32 %v618, 16
    %v623 = vshll.u32 %v619, 16
    %v624 = vshrl.u32 %v619, 16
    %vm625 = vc.u32 %v617, %v621
    %v626 = vsel %vm625, 1, 0
    %v627 = vadd.s32 %v617, %v621
    %v628 = vadd.s32 %v620, %v626
    %vm629 = vc.u32 %v627, %v623
    %v630 = vsel %vm629, 1, 0
    %v631 = vadd.s32 %v627, %v623
    %v632 = vadd.s32 %v628, %v630
    %v633 = vadd.s32 %v632, %v622
    %v634 = vadd.s32 %v633, %v624
    %v635 = vmul.u32 %v590, %v581
    %v636 = vadd.s32 %v612, %v631
    %vm637 = vc.u32 %v612, %v631
    %v638 = vadd.s32 %v634, 1
    %v639 = vsel %vm637, %v638, %v634
    %v640 = vadd.s32 %v635, %v639
    %v641 = vadd.s32 %v640, 536870912
    %v642 = vshrl.u32 %v641, 30
    %v643 = vshll.u32 %v642, 30
    %v644 = vsub.s32 %v640, %v643
    %vm645 = vcmp.lt.s32.totalorder %v644, 0
    %v646 = vsub.s32 0, %v644
    %v647 = vsel %vm645, %v646, %v644
    %v648 = vclz %v647
    %v649 = vsub.s32 %v648, 2
    %vm650 = vcmp.gt.s32.totalorder 0, %v649
    %v651 = vsel %vm650, 0, %v649
    %v652 = vsub.s32 32, %v651
    %v653 = vshll.u32 %v644, %v651
    %v654 = vshrl.u32 %v636, %v652
    %v655 = vor.u32 %v653, %v654
    %v656 = vsub.s32 4294967266, %v651
    %v657 = vadd.s32 %v656, 127
    %v658 = vshll.u32 %v657, 23
    %v659 = vor.u32 4788187, %v658
    %v660 = vand.u32 2147483647, %v659
    %v662 = vcvt.s32.f32 %v655
    %v663 = vmul.f32 %v662, %v660
    %v664 = vxor.u32 %v663, 2147483648
    %v665 = vsel %vm544, %v664, %v663
    %v666 = vsub.s32 4, %v642
    %v667 = vsel %vm544, %v666, %v642
    %v668 = vsel %vm543, %v75, %v665
    %v669 = vsel %vm543, 0, %v667
    %v670 = vmul.f32 %v668, %v668
    %v671 = vmul.f32 %v670, -0.001358992
    %v672 = vadd.f32 %v671, 0.041655596
    %v673 = vmul.f32 %v670, %v672
    %v674 = vadd.f32 %v673, -0.4999988
    %v675 = vmul.f32 %v670, %v674
    %v676 = vadd.f32 1.0, %v675
    %v677 = vmul.f32 %v668, %v668
    %v678 = vmul.f32 %v677, -0.00019511016
    %v679 = vadd.f32 %v678, 0.008332121
    %v680 = vmul.f32 %v677, %v679
    %v681 = vadd.f32 %v680, -0.16666654
    %v682 = vmul.f32 %v677, %v681
    %v683 = vadd.f32 %v682, 1.0
    %v684 = vmul.f32 %v683, %v668
    %vm685 = vweird.f32 %v75
    %v686 = vand.u32 %v669, 3
    %vm687 = vcmp.lt.s32.totalorder %v686, 2
    %vm688 = vcmp.eq.s32.totalorder %v686, 0
    %v689 = vxor.u32 %v684, 2147483648
    %v690 = vsel %vm688, %v676, %v689
    %vm691 = vcmp.eq.s32.totalorder %v686, 2
    %v692 = vxor.u32 %v676, 2147483648
    %v693 = vsel %vm691, %v692, %v684
    %v694 = vsel %vm687, %v690, %v693
    %v695 = vsel %vm685, nan, %v694
    %v696 = vand.u32 2147483647, %v76
    %vm697 = vcmp.le.f32.partialorder %v696, 0.7853982
    %vm698 = vcmp.lt.s32.totalorder %v76, 0
    %v699 = vand.u32 %v76, 2139095040
    %v700 = vshrl.u32 %v699, 23
    %v701 = vsub.s32 %v700, 127
    %v702 = vand.u32 2147483647, %v76
    %v703 = vand.u32 %v702, 8388607
    %v704 = vor.u32 %v703, 8388608
    %v705 = vsub.s32 0, %v704
    %v706 = vadd.s32 %v701, 1
    %vm707 = vcmp.gt.s32.totalorder %v706, 0
    %v708 = vsel %vm707, %v706, 0
    %v709 = vshrl.u32 %v708, 5
    %v710 = vand.u32 %v708, 31
    %v711 = vsub.s32 32, %v710
    %v712 = vshrl.u32 683565275, %v711
    %v713 = vshll.u32 683565275, %v710
    %v714 = vshrl.u32 2475754826, %v711
    %v715 = vor.u32 %v713, %v714
    %v716 = vshll.u32 2475754826, %v710
    %v717 = vshrl.u32 2131351028, %v711
    %v718 = vor.u32 %v716, %v717
    %v719 = vshll.u32 2131351028, %v710
    %v720 = vshrl.u32 2102212464, %v711
    %v721 = vor.u32 %v719, %v720
    %v722 = vshll.u32 2102212464, %v710
    %v723 = vshrl.u32 920167782, %v711
    %v724 = vor.u32 %v722, %v723
    %v725 = vshll.u32 920167782, %v710
    %v726 = vshrl.u32 1326507024, %v711
    %v727 = vor.u32 %v725, %v726
    %vm728 = vcmp.lt.s32.totalorder %v709, 1
    %vm729 = vcmp.lt.s32.totalorder %v709, 2
    %vm730 = vcmp.lt.s32.totalorder %v709, 3
    %vm731 = vcmp.lt.s32.totalorder %v709, 4
    %v732 = vsel %vm728, %v712, %v715
    %v733 = vsel %vm731, %v721, 2102212464
    %v734 = vsel %vm730, %v718, %v733
    %v735 = vsel %vm729, %v732, %v734
    %v736 = vsel %vm728, %v715, %v718
    %v737 = vsel %vm731, %v724, 920167782
    %v738 = vsel %vm730, %v721, %v737
    %v739 = vsel %vm729, %v736, %v738
    %v740 = vsel %vm728, %v718, %v721
    %v741 = vsel %vm731, %v727, 1326507024
    %v742 = vsel %vm730, %v724, %v741
    %v743 = vsel %vm729, %v740, %v742
    %v744 = vshll.u32 %v704, 8
    %v745 = vand.u32 %v744, 65535
    %v746 = vshrl.u32 %v744, 16
    %v747 = vand.u32 %v743, 65535
    %v748 = vshrl.u32 %v743, 16
    %v749 = vmul.u32 %v745, %v747
    %v750 = vmul.u32 %v745, %v748
    %v751 = vmul.u32 %v746, %v747
    %v752 = vmul.u32 %v746, %v748
    %v753 = vshll.u32 %v750, 16
    %v754 = vshrl.u32 %v750, 16
    %v755 = vshll.u32 %v751, 16
    %v756 = vshrl.u32 %v751, 16
    %vm757 = vc.u32 %v749, %v753
    %v758 = vsel %vm757, 1, 0
    %v759 = vadd.s32 %v749, %v753
    %v760 = vadd.s32 %v752, %v758
    %vm761 = vc.u32 %v759, %v755
    %v762 = vsel %vm761, 1, 0
    %v763 = vadd.s32 %v759, %v755
    %v764 = vadd.s32 %v760, %v762
    %v765 = vadd.s32 %v764, %v754
    %v766 = vadd.s32 %v765, %v756
    %v767 = vand.u32 %v744, 65535
    %v768 = vshrl.u32 %v744, 16
    %v769 = vand.u32 %v739, 65535
    %v770 = vshrl.u32 %v739, 16
    %v771 = vmul.u32 %v767, %v769
    %v772 = vmul.u32 %v767, %v770
    %v773 = vmul.u32 %v768, %v769
    %v774 = vmul.u32 %v768, %v770
    %v775 = vshll.u32 %v772, 16
    %v776 = vshrl.u32 %v772, 16
    %v777 = vshll.u32 %v773, 16
    %v778 = vshrl.u32 %v773, 16
    %vm779 = vc.u32 %v771, %v775
    %v780 = vsel %vm779, 1, 0
    %v781 = vadd.s32 %v771, %v775
    %v782 = vadd.s32 %v774, %v780
    %vm783 = vc.u32 %v781, %v777
    %v784 = vsel %vm783, 1, 0
    %v785 = vadd.s32 %v781, %v777
    %v786 = vadd.s32 %v782, %v784
    %v787 = vadd.s32 %v786, %v776
    %v788 = vadd.s32 %v787, %v778
    %v789 = vmul.u32 %v744, %v735
    %v790 = vadd.s32 %v766, %v785
    %vm791 = vc.u32 %v766, %v785
    %v792 = vadd.s32 %v788, 1
    %v793 = vsel %vm791, %v792, %v788
    %v794 = vadd.s32 %v789, %v793
    %v795 = vadd.s32 %v794, 536870912
    %v796 = vshrl.u32 %v795, 30
    %v797 = vshll.u32 %v796, 30
    %v798 = vsub.s32 %v794, %v797
    %vm799 = vcmp.lt.s32.totalorder %v798, 0
    %v800 = vsub.s32 0, %v798
    %v801 = vsel %vm799, %v800, %v798
    %v802 = vclz %v801
    %v803 = vsub.s32 %v802, 2
    %vm804 = vcmp.gt.s32.totalorder 0, %v803
    %v805 = vsel %vm804, 0, %v803
    %v806 = vsub.s32 32, %v805
    %v807 = vshll.u32 %v798, %v805
    %v808 = vshrl.u32 %v790, %v806
    %v809 = vor.u32 %v807, %v808
    %v810 = vsub.s32 4294967266, %v805
    %v811 = vadd.s32 %v810, 127
    %v812 = vshll.u32 %v811, 23
    %v813 = vor.u32 4788187, %v812
    %v814 = vand.u32 2147483647, %v813
    %v816 = vcvt.s32.f32 %v809
    %v817 = vmul.f32 %v816, %v814
    %v818 = vxor.u32 %v817, 2147483648
    %v819 = vsel %vm698, %v818, %v817
    %v820 = vsub.s32 4, %v796
    %v821 = vsel %vm698, %v820, %v796
    %v822 = vsel %vm697, %v76, %v819
    %v823 = vsel %vm697, 0, %v821
    %v824 = vmul.f32 %v822, %v822
    %v825 = vmul.f32 %v824, -0.001358992
    %v826 = vadd.f32 %v825, 0.041655596
    %v827 = vmul.f32 %v824, %v826
    %v828 = vadd.f32 %v827, -0.4999988
    %v829 = vmul.f32 %v824, %v828
    %v830 = vadd.f32 1.0, %v829
    %v831 = vmul.f32 %v822, %v822
    %v832 = vmul.f32 %v831, -0.00019511016
    %v833 = vadd.f32 %v832, 0.008332121
    %v834 = vmul.f32 %v831, %v833
    %v835 = vadd.f32 %v834, -0.16666654
    %v836 = vmul.f32 %v831, %v835
    %v837 = vadd.f32 %v836, 1.0
    %v838 = vmul.f32 %v837, %v822
    %vm839 = vweird.f32 %v76
    %v840 = vand.u32 %v823, 3
    %vm841 = vcmp.lt.s32.totalorder %v840, 2
    %vm842 = vcmp.eq.s32.totalorder %v840, 0
    %v843 = vxor.u32 %v838, 2147483648
    %v844 = vsel %vm842, %v830, %v843
    %vm845 = vcmp.eq.s32.totalorder %v840, 2
    %v846 = vxor.u32 %v830, 2147483648
    %v847 = vsel %vm845, %v846, %v838
    %v848 = vsel %vm841, %v844, %v847
    %v849 = vsel %vm839, nan, %v848
    %v850 = vand.u32 2147483647, %v77
    %vm851 = vcmp.le.f32.partialorder %v850, 0.7853982
    %vm852 = vcmp.lt.s32.totalorder %v77, 0
    %v853 = vand.u32 %v77, 2139095040
    %v854 = vshrl.u32 %v853, 23
    %v855 = vsub.s32 %v854, 127
    %v856 = vand.u32 2147483647, %v77
    %v857 = vand.u32 %v856, 8388607
    %v858 = vor.u32 %v857, 8388608
    %v859 = vsub.s32 0, %v858
    %v860 = vadd.s32 %v855, 1
    %vm861 = vcmp.gt.s32.totalorder %v860, 0
    %v862 = vsel %vm861, %v860, 0
    %v863 = vshrl.u32 %v862, 5
    %v864 = vand.u32 %v862, 31
    %v865 = vsub.s32 32, %v864
    %v866 = vshrl.u32 683565275, %v865
    %v867 = vshll.u32 683565275, %v864
    %v868 = vshrl.u32 2475754826, %v865
    %v869 = vor.u32 %v867, %v868
    %v870 = vshll.u32 2475754826, %v864
    %v871 = vshrl.u32 2131351028, %v865
    %v872 = vor.u32 %v870, %v871
    %v873 = vshll.u32 2131351028, %v864
    %v874 = vshrl.u32 2102212464, %v865
    %v875 = vor.u32 %v873, %v874
    %v876 = vshll.u32 2102212464, %v864
    %v877 = vshrl.u32 920167782, %v865
    %v878 = vor.u32 %v876, %v877
    %v879 = vshll.u32 920167782, %v864
    %v880 = vshrl.u32 1326507024, %v865
    %v881 = vor.u32 %v879, %v880
    %vm882 = vcmp.lt.s32.totalorder %v863, 1
    %vm883 = vcmp.lt.s32.totalorder %v863, 2
    %vm884 = vcmp.lt.s32.totalorder %v863, 3
    %vm885 = vcmp.lt.s32.totalorder %v863, 4
    %v886 = vsel %vm882, %v866, %v869
    %v887 = vsel %vm885, %v875, 2102212464
    %v888 = vsel %vm884, %v872, %v887
    %v889 = vsel %vm883, %v886, %v888
    %v890 = vsel %vm882, %v869, %v872
    %v891 = vsel %vm885, %v878, 920167782
    %v892 = vsel %vm884, %v875, %v891
    %v893 = vsel %vm883, %v890, %v892
    %v894 = vsel %vm882, %v872, %v875
    %v895 = vsel %vm885, %v881, 1326507024
    %v896 = vsel %vm884, %v878, %v895
    %v897 = vsel %vm883, %v894, %v896
    %v898 = vshll.u32 %v858, 8
    %v899 = vand.u32 %v898, 65535
    %v900 = vshrl.u32 %v898, 16
    %v901 = vand.u32 %v897, 65535
    %v902 = vshrl.u32 %v897, 16
    %v903 = vmul.u32 %v899, %v901
    %v904 = vmul.u32 %v899, %v902
    %v905 = vmul.u32 %v900, %v901
    %v906 = vmul.u32 %v900, %v902
    %v907 = vshll.u32 %v904, 16
    %v908 = vshrl.u32 %v904, 16
    %v909 = vshll.u32 %v905, 16
    %v910 = vshrl.u32 %v905, 16
    %vm911 = vc.u32 %v903, %v907
    %v912 = vsel %vm911, 1, 0
    %v913 = vadd.s32 %v903, %v907
    %v914 = vadd.s32 %v906, %v912
    %vm915 = vc.u32 %v913, %v909
    %v916 = vsel %vm915, 1, 0
    %v917 = vadd.s32 %v913, %v909
    %v918 = vadd.s32 %v914, %v916
    %v919 = vadd.s32 %v918, %v908
    %v920 = vadd.s32 %v919, %v910
    %v921 = vand.u32 %v898, 65535
    %v922 = vshrl.u32 %v898, 16
    %v923 = vand.u32 %v893, 65535
    %v924 = vshrl.u32 %v893, 16
    %v925 = vmul.u32 %v921, %v923
    %v926 = vmul.u32 %v921, %v924
    %v927 = vmul.u32 %v922, %v923
    %v928 = vmul.u32 %v922, %v924
    %v929 = vshll.u32 %v926, 16
    %v930 = vshrl.u32 %v926, 16
    %v931 = vshll.u32 %v927, 16
    %v932 = vshrl.u32 %v927, 16
    %vm933 = vc.u32 %v925, %v929
    %v934 = vsel %vm933, 1, 0
    %v935 = vadd.s32 %v925, %v929
    %v936 = vadd.s32 %v928, %v934
    %vm937 = vc.u32 %v935, %v931
    %v938 = vsel %vm937, 1, 0
    %v939 = vadd.s32 %v935, %v931
    %v940 = vadd.s32 %v936, %v938
    %v941 = vadd.s32 %v940, %v930
    %v942 = vadd.s32 %v941, %v932
    %v943 = vmul.u32 %v898, %v889
    %v944 = vadd.s32 %v920, %v939
    %vm945 = vc.u32 %v920, %v939
    %v946 = vadd.s32 %v942, 1
    %v947 = vsel %vm945, %v946, %v942
    %v948 = vadd.s32 %v943, %v947
    %v949 = vadd.s32 %v948, 536870912
    %v950 = vshrl.u32 %v949, 30
    %v951 = vshll.u32 %v950, 30
    %v952 = vsub.s32 %v948, %v951
    %vm953 = vcmp.lt.s32.totalorder %v952, 0
    %v954 = vsub.s32 0, %v952
    %v955 = vsel %vm953, %v954, %v952
    %v956 = vclz %v955
    %v957 = vsub.s32 %v956, 2
    %vm958 = vcmp.gt.s32.totalorder 0, %v957
    %v959 = vsel %vm958, 0, %v957
    %v960 = vsub.s32 32, %v959
    %v961 = vshll.u32 %v952, %v959
    %v962 = vshrl.u32 %v944, %v960
    %v963 = vor.u32 %v961, %v962
    %v964 = vsub.s32 4294967266, %v959
    %v965 = vadd.s32 %v964, 127
    %v966 = vshll.u32 %v965, 23
    %v967 = vor.u32 4788187, %v966
    %v968 = vand.u32 2147483647, %v967
    %v970 = vcvt.s32.f32 %v963
    %v971 = vmul.f32 %v970, %v968
    %v972 = vxor.u32 %v971, 2147483648
    %v973 = vsel %vm852, %v972, %v971
    %v974 = vsub.s32 4, %v950
    %v975 = vsel %vm852, %v974, %v950
    %v976 = vsel %vm851, %v77, %v973
    %v977 = vsel %vm851, 0, %v975
    %v978 = vmul.f32 %v976, %v976
    %v979 = vmul.f32 %v978, -0.001358992
    %v980 = vadd.f32 %v979, 0.041655596
    %v981 = vmul.f32 %v978, %v980
    %v982 = vadd.f32 %v981, -0.4999988
    %v983 = vmul.f32 %v978, %v982
    %v984 = vadd.f32 1.0, %v983
    %v985 = vmul.f32 %v976, %v976
    %v986 = vmul.f32 %v985, -0.00019511016
    %v987 = vadd.f32 %v986, 0.008332121
    %v988 = vmul.f32 %v985, %v987
    %v989 = vadd.f32 %v988, -0.16666654
    %v990 = vmul.f32 %v985, %v989
    %v991 = vadd.f32 %v990, 1.0
    %v992 = vmul.f32 %v991, %v976
    %vm993 = vweird.f32 %v77
    %v994 = vand.u32 %v977, 3
    %vm995 = vcmp.lt.s32.totalorder %v994, 2
    %vm996 = vcmp.eq.s32.totalorder %v994, 0
    %v997 = vxor.u32 %v992, 2147483648
    %v998 = vsel %vm996, %v984, %v997
    %vm999 = vcmp.eq.s32.totalorder %v994, 2
    %v1000 = vxor.u32 %v984, 2147483648
    %v1001 = vsel %vm999, %v1000, %v992
    %v1002 = vsel %vm995, %v998, %v1001
    %v1003 = vsel %vm993, nan, %v1002
    %v1004 = vand.u32 2147483647, %v78
    %vm1005 = vcmp.le.f32.partialorder %v1004, 0.7853982
    %vm1006 = vcmp.lt.s32.totalorder %v78, 0
    %v1007 = vand.u32 %v78, 2139095040
    %v1008 = vshrl.u32 %v1007, 23
    %v1009 = vsub.s32 %v1008, 127
    %v1010 = vand.u32 2147483647, %v78
    %v1011 = vand.u32 %v1010, 8388607
    %v1012 = vor.u32 %v1011, 8388608
    %v1013 = vsub.s32 0, %v1012
    %v1014 = vadd.s32 %v1009, 1
    %vm1015 = vcmp.gt.s32.totalorder %v1014, 0
    %v1016 = vsel %vm1015, %v1014, 0
    %v1017 = vshrl.u32 %v1016, 5
    %v1018 = vand.u32 %v1016, 31
    %v1019 = vsub.s32 32, %v1018
    %v1020 = vshrl.u32 683565275, %v1019
    %v1021 = vshll.u32 683565275, %v1018
    %v1022 = vshrl.u32 2475754826, %v1019
    %v1023 = vor.u32 %v1021, %v1022
    %v1024 = vshll.u32 2475754826, %v1018
    %v1025 = vshrl.u32 2131351028, %v1019
    %v1026 = vor.u32 %v1024, %v1025
    %v1027 = vshll.u32 2131351028, %v1018
    %v1028 = vshrl.u32 2102212464, %v1019
    %v1029 = vor.u32 %v1027, %v1028
    %v1030 = vshll.u32 2102212464, %v1018
    %v1031 = vshrl.u32 920167782, %v1019
    %v1032 = vor.u32 %v1030, %v1031
    %v1033 = vshll.u32 920167782, %v1018
    %v1034 = vshrl.u32 1326507024, %v1019
    %v1035 = vor.u32 %v1033, %v1034
    %vm1036 = vcmp.lt.s32.totalorder %v1017, 1
    %vm1037 = vcmp.lt.s32.totalorder %v1017, 2
    %vm1038 = vcmp.lt.s32.totalorder %v1017, 3
    %vm1039 = vcmp.lt.s32.totalorder %v1017, 4
    %v1040 = vsel %vm1036, %v1020, %v1023
    %v1041 = vsel %vm1039, %v1029, 2102212464
    %v1042 = vsel %vm1038, %v1026, %v1041
    %v1043 = vsel %vm1037, %v1040, %v1042
    %v1044 = vsel %vm1036, %v1023, %v1026
    %v1045 = vsel %vm1039, %v1032, 920167782
    %v1046 = vsel %vm1038, %v1029, %v1045
    %v1047 = vsel %vm1037, %v1044, %v1046
    %v1048 = vsel %vm1036, %v1026, %v1029
    %v1049 = vsel %vm1039, %v1035, 1326507024
    %v1050 = vsel %vm1038, %v1032, %v1049
    %v1051 = vsel %vm1037, %v1048, %v1050
    %v1052 = vshll.u32 %v1012, 8
    %v1053 = vand.u32 %v1052, 65535
    %v1054 = vshrl.u32 %v1052, 16
    %v1055 = vand.u32 %v1051, 65535
    %v1056 = vshrl.u32 %v1051, 16
    %v1057 = vmul.u32 %v1053, %v1055
    %v1058 = vmul.u32 %v1053, %v1056
    %v1059 = vmul.u32 %v1054, %v1055
    %v1060 = vmul.u32 %v1054, %v1056
    %v1061 = vshll.u32 %v1058, 16
    %v1062 = vshrl.u32 %v1058, 16
    %v1063 = vshll.u32 %v1059, 16
    %v1064 = vshrl.u32 %v1059, 16
    %vm1065 = vc.u32 %v1057, %v1061
    %v1066 = vsel %vm1065, 1, 0
    %v1067 = vadd.s32 %v1057, %v1061
    %v1068 = vadd.s32 %v1060, %v1066
    %vm1069 = vc.u32 %v1067, %v1063
    %v1070 = vsel %vm1069, 1, 0
    %v1071 = vadd.s32 %v1067, %v1063
    %v1072 = vadd.s32 %v1068, %v1070
    %v1073 = vadd.s32 %v1072, %v1062
    %v1074 = vadd.s32 %v1073, %v1064
    %v1075 = vand.u32 %v1052, 65535
    %v1076 = vshrl.u32 %v1052, 16
    %v1077 = vand.u32 %v1047, 65535
    %v1078 = vshrl.u32 %v1047, 16
    %v1079 = vmul.u32 %v1075, %v1077
    %v1080 = vmul.u32 %v1075, %v1078
    %v1081 = vmul.u32 %v1076, %v1077
    %v1082 = vmul.u32 %v1076, %v1078
    %v1083 = vshll.u32 %v1080, 16
    %v1084 = vshrl.u32 %v1080, 16
    %v1085 = vshll.u32 %v1081, 16
    %v1086 = vshrl.u32 %v1081, 16
    %vm1087 = vc.u32 %v1079, %v1083
    %v1088 = vsel %vm1087, 1, 0
    %v1089 = vadd.s32 %v1079, %v1083
    %v1090 = vadd.s32 %v1082, %v1088
    %vm1091 = vc.u32 %v1089, %v1085
    %v1092 = vsel %vm1091, 1, 0
    %v1093 = vadd.s32 %v1089, %v1085
    %v1094 = vadd.s32 %v1090, %v1092
    %v1095 = vadd.s32 %v1094, %v1084
    %v1096 = vadd.s32 %v1095, %v1086
    %v1097 = vmul.u32 %v1052, %v1043
    %v1098 = vadd.s32 %v1074, %v1093
    %vm1099 = vc.u32 %v1074, %v1093
    %v1100 = vadd.s32 %v1096, 1
    %v1101 = vsel %vm1099, %v1100, %v1096
    %v1102 = vadd.s32 %v1097, %v1101
    %v1103 = vadd.s32 %v1102, 536870912
    %v1104 = vshrl.u32 %v1103, 30
    %v1105 = vshll.u32 %v1104, 30
    %v1106 = vsub.s32 %v1102, %v1105
    %vm1107 = vcmp.lt.s32.totalorder %v1106, 0
    %v1108 = vsub.s32 0, %v1106
    %v1109 = vsel %vm1107, %v1108, %v1106
    %v1110 = vclz %v1109
    %v1111 = vsub.s32 %v1110, 2
    %vm1112 = vcmp.gt.s32.totalorder 0, %v1111
    %v1113 = vsel %vm1112, 0, %v1111
    %v1114 = vsub.s32 32, %v1113
    %v1115 = vshll.u32 %v1106, %v1113
    %v1116 = vshrl.u32 %v1098, %v1114
    %v1117 = vor.u32 %v1115, %v1116
    %v1118 = vsub.s32 4294967266, %v1113
    %v1119 = vadd.s32 %v1118, 127
    %v1120 = vshll.u32 %v1119, 23
    %v1121 = vor.u32 4788187, %v1120
    %v1122 = vand.u32 2147483647, %v1121
    %v1124 = vcvt.s32.f32 %v1117
    %v1125 = vmul.f32 %v1124, %v1122
    %v1126 = vxor.u32 %v1125, 2147483648
    %v1127 = vsel %vm1006, %v1126, %v1125
    %v1128 = vsub.s32 4, %v1104
    %v1129 = vsel %vm1006, %v1128, %v1104
    %v1130 = vsel %vm1005, %v78, %v1127
    %v1131 = vsel %vm1005, 0, %v1129
    %v1132 = vmul.f32 %v1130, %v1130
    %v1133 = vmul.f32 %v1132, -0.001358992
    %v1134 = vadd.f32 %v1133, 0.041655596
    %v1135 = vmul.f32 %v1132, %v1134
    %v1136 = vadd.f32 %v1135, -0.4999988
    %v1137 = vmul.f32 %v1132, %v1136
    %v1138 = vadd.f32 1.0, %v1137
    %v1139 = vmul.f32 %v1130, %v1130
    %v1140 = vmul.f32 %v1139, -0.00019511016
    %v1141 = vadd.f32 %v1140, 0.008332121
    %v1142 = vmul.f32 %v1139, %v1141
    %v1143 = vadd.f32 %v1142, -0.16666654
    %v1144 = vmul.f32 %v1139, %v1143
    %v1145 = vadd.f32 %v1144, 1.0
    %v1146 = vmul.f32 %v1145, %v1130
    %vm1147 = vweird.f32 %v78
    %v1148 = vand.u32 %v1131, 3
    %vm1149 = vcmp.lt.s32.totalorder %v1148, 2
    %vm1150 = vcmp.eq.s32.totalorder %v1148, 0
    %v1151 = vxor.u32 %v1146, 2147483648
    %v1152 = vsel %vm1150, %v1138, %v1151
    %vm1153 = vcmp.eq.s32.totalorder %v1148, 2
    %v1154 = vxor.u32 %v1138, 2147483648
    %v1155 = vsel %vm1153, %v1154, %v1146
    %v1156 = vsel %vm1149, %v1152, %v1155
    %v1157 = vsel %vm1147, nan, %v1156
    %v1158 = vand.u32 2147483647, %v79
    %vm1159 = vcmp.le.f32.partialorder %v1158, 0.7853982
    %vm1160 = vcmp.lt.s32.totalorder %v79, 0
    %v1161 = vand.u32 %v79, 2139095040
    %v1162 = vshrl.u32 %v1161, 23
    %v1163 = vsub.s32 %v1162, 127
    %v1164 = vand.u32 2147483647, %v79
    %v1165 = vand.u32 %v1164, 8388607
    %v1166 = vor.u32 %v1165, 8388608
    %v1167 = vsub.s32 0, %v1166
    %v1168 = vadd.s32 %v1163, 1
    %vm1169 = vcmp.gt.s32.totalorder %v1168, 0
    %v1170 = vsel %vm1169, %v1168, 0
    %v1171 = vshrl.u32 %v1170, 5
    %v1172 = vand.u32 %v1170, 31
    %v1173 = vsub.s32 32, %v1172
    %v1174 = vshrl.u32 683565275, %v1173
    %v1175 = vshll.u32 683565275, %v1172
    %v1176 = vshrl.u32 2475754826, %v1173
    %v1177 = vor.u32 %v1175, %v1176
    %v1178 = vshll.u32 2475754826, %v1172
    %v1179 = vshrl.u32 2131351028, %v1173
    %v1180 = vor.u32 %v1178, %v1179
    %v1181 = vshll.u32 2131351028, %v1172
    %v1182 = vshrl.u32 2102212464, %v1173
    %v1183 = vor.u32 %v1181, %v1182
    %v1184 = vshll.u32 2102212464, %v1172
    %v1185 = vshrl.u32 920167782, %v1173
    %v1186 = vor.u32 %v1184, %v1185
    %v1187 = vshll.u32 920167782, %v1172
    %v1188 = vshrl.u32 1326507024, %v1173
    %v1189 = vor.u32 %v1187, %v1188
    %vm1190 = vcmp.lt.s32.totalorder %v1171, 1
    %vm1191 = vcmp.lt.s32.totalorder %v1171, 2
    %vm1192 = vcmp.lt.s32.totalorder %v1171, 3
    %vm1193 = vcmp.lt.s32.totalorder %v1171, 4
    %v1194 = vsel %vm1190, %v1174, %v1177
    %v1195 = vsel %vm1193, %v1183, 2102212464
    %v1196 = vsel %vm1192, %v1180, %v1195
    %v1197 = vsel %vm1191, %v1194, %v1196
    %v1198 = vsel %vm1190, %v1177, %v1180
    %v1199 = vsel %vm1193, %v1186, 920167782
    %v1200 = vsel %vm1192, %v1183, %v1199
    %v1201 = vsel %vm1191, %v1198, %v1200
    %v1202 = vsel %vm1190, %v1180, %v1183
    %v1203 = vsel %vm1193, %v1189, 1326507024
    %v1204 = vsel %vm1192, %v1186, %v1203
    %v1205 = vsel %vm1191, %v1202, %v1204
    %v1206 = vshll.u32 %v1166, 8
    %v1207 = vand.u32 %v1206, 65535
    %v1208 = vshrl.u32 %v1206, 16
    %v1209 = vand.u32 %v1205, 65535
    %v1210 = vshrl.u32 %v1205, 16
    %v1211 = vmul.u32 %v1207, %v1209
    %v1212 = vmul.u32 %v1207, %v1210
    %v1213 = vmul.u32 %v1208, %v1209
    %v1214 = vmul.u32 %v1208, %v1210
    %v1215 = vshll.u32 %v1212, 16
    %v1216 = vshrl.u32 %v1212, 16
    %v1217 = vshll.u32 %v1213, 16
    %v1218 = vshrl.u32 %v1213, 16
    %vm1219 = vc.u32 %v1211, %v1215
    %v1220 = vsel %vm1219, 1, 0
    %v1221 = vadd.s32 %v1211, %v1215
    %v1222 = vadd.s32 %v1214, %v1220
    %vm1223 = vc.u32 %v1221, %v1217
    %v1224 = vsel %vm1223, 1, 0
    %v1225 = vadd.s32 %v1221, %v1217
    %v1226 = vadd.s32 %v1222, %v1224
    %v1227 = vadd.s32 %v1226, %v1216
    %v1228 = vadd.s32 %v1227, %v1218
    %v1229 = vand.u32 %v1206, 65535
    %v1230 = vshrl.u32 %v1206, 16
    %v1231 = vand.u32 %v1201, 65535
    %v1232 = vshrl.u32 %v1201, 16
    %v1233 = vmul.u32 %v1229, %v1231
    %v1234 = vmul.u32 %v1229, %v1232
    %v1235 = vmul.u32 %v1230, %v1231
    %v1236 = vmul.u32 %v1230, %v1232
    %v1237 = vshll.u32 %v1234, 16
    %v1238 = vshrl.u32 %v1234, 16
    %v1239 = vshll.u32 %v1235, 16
    %v1240 = vshrl.u32 %v1235, 16
    %vm1241 = vc.u32 %v1233, %v1237
    %v1242 = vsel %vm1241, 1, 0
    %v1243 = vadd.s32 %v1233, %v1237
    %v1244 = vadd.s32 %v1236, %v1242
    %vm1245 = vc.u32 %v1243, %v1239
    %v1246 = vsel %vm1245, 1, 0
    %v1247 = vadd.s32 %v1243, %v1239
    %v1248 = vadd.s32 %v1244, %v1246
    %v1249 = vadd.s32 %v1248, %v1238
    %v1250 = vadd.s32 %v1249, %v1240
    %v1251 = vmul.u32 %v1206, %v1197
    %v1252 = vadd.s32 %v1228, %v1247
    %vm1253 = vc.u32 %v1228, %v1247
    %v1254 = vadd.s32 %v1250, 1
    %v1255 = vsel %vm1253, %v1254, %v1250
    %v1256 = vadd.s32 %v1251, %v1255
    %v1257 = vadd.s32 %v1256, 536870912
    %v1258 = vshrl.u32 %v1257, 30
    %v1259 = vshll.u32 %v1258, 30
    %v1260 = vsub.s32 %v1256, %v1259
    %vm1261 = vcmp.lt.s32.totalorder %v1260, 0
    %v1262 = vsub.s32 0, %v1260
    %v1263 = vsel %vm1261, %v1262, %v1260
    %v1264 = vclz %v1263
    %v1265 = vsub.s32 %v1264, 2
    %vm1266 = vcmp.gt.s32.totalorder 0, %v1265
    %v1267 = vsel %vm1266, 0, %v1265
    %v1268 = vsub.s32 32, %v1267
    %v1269 = vshll.u32 %v1260, %v1267
    %v1270 = vshrl.u32 %v1252, %v1268
    %v1271 = vor.u32 %v1269, %v1270
    %v1272 = vsub.s32 4294967266, %v1267
    %v1273 = vadd.s32 %v1272, 127
    %v1274 = vshll.u32 %v1273, 23
    %v1275 = vor.u32 4788187, %v1274
    %v1276 = vand.u32 2147483647, %v1275
    %v1278 = vcvt.s32.f32 %v1271
    %v1279 = vmul.f32 %v1278, %v1276
    %v1280 = vxor.u32 %v1279, 2147483648
    %v1281 = vsel %vm1160, %v1280, %v1279
    %v1282 = vsub.s32 4, %v1258
    %v1283 = vsel %vm1160, %v1282, %v1258
    %v1284 = vsel %vm1159, %v79, %v1281
    %v1285 = vsel %vm1159, 0, %v1283
    %v1286 = vmul.f32 %v1284, %v1284
    %v1287 = vmul.f32 %v1286, -0.001358992
    %v1288 = vadd.f32 %v1287, 0.041655596
    %v1289 = vmul.f32 %v1286, %v1288
    %v1290 = vadd.f32 %v1289, -0.4999988
    %v1291 = vmul.f32 %v1286, %v1290
    %v1292 = vadd.f32 1.0, %v1291
    %v1293 = vmul.f32 %v1284, %v1284
    %v1294 = vmul.f32 %v1293, -0.00019511016
    %v1295 = vadd.f32 %v1294, 0.008332121
    %v1296 = vmul.f32 %v1293, %v1295
    %v1297 = vadd.f32 %v1296, -0.16666654
    %v1298 = vmul.f32 %v1293, %v1297
    %v1299 = vadd.f32 %v1298, 1.0
    %v1300 = vmul.f32 %v1299, %v1284
    %vm1301 = vweird.f32 %v79
    %v1302 = vand.u32 %v1285, 3
    %vm1303 = vcmp.lt.s32.totalorder %v1302, 2
    %vm1304 = vcmp.eq.s32.totalorder %v1302, 0
    %v1305 = vxor.u32 %v1300, 2147483648
    %v1306 = vsel %vm1304, %v1292, %v1305
    %vm1307 = vcmp.eq.s32.totalorder %v1302, 2
    %v1308 = vxor.u32 %v1292, 2147483648
    %v1309 = vsel %vm1307, %v1308, %v1300
    %v1310 = vsel %vm1303, %v1306, %v1309
    %v1311 = vsel %vm1301, nan, %v1310
    %1312 = vst [vmem:[#allocation5] sm:$0xff] %v233
    %1313 = vst [vmem:[#allocation5 + $0x8] sm:$0xff] %v387
    %1314 = vst [vmem:[#allocation5 + $0x10] sm:$0xff] %v541
    %1315 = vst [vmem:[#allocation5 + $0x18] sm:$0xff] %v695
    %1316 = vst [vmem:[#allocation5 + $0x20] sm:$0xff] %v849
    %1317 = vst [vmem:[#allocation5 + $0x28] sm:$0xff] %v1003
    %1318 = vst [vmem:[#allocation5 + $0x30] sm:$0xff] %v1157
    %1319 = vst [vmem:[#allocation5 + $0x38] sm:$0xff] %v1311
    %v1320 = vand.u32 2147483647, %v72
    %vm1321 = vcmp.le.f32.partialorder %v1320, 0.7853982
    %vm1322 = vcmp.lt.s32.totalorder %v72, 0
    %v1323 = vand.u32 %v72, 2139095040
    %v1324 = vshrl.u32 %v1323, 23
    %v1325 = vsub.s32 %v1324, 127
    %v1326 = vand.u32 2147483647, %v72
    %v1327 = vand.u32 %v1326, 8388607
    %v1328 = vor.u32 %v1327, 8388608
    %v1329 = vsub.s32 0, %v1328
    %v1330 = vadd.s32 %v1325, 1
    %vm1331 = vcmp.gt.s32.totalorder %v1330, 0
    %v1332 = vsel %vm1331, %v1330, 0
    %v1333 = vshrl.u32 %v1332, 5
    %v1334 = vand.u32 %v1332, 31
    %v1335 = vsub.s32 32, %v1334
    %v1336 = vshrl.u32 683565275, %v1335
    %v1337 = vshll.u32 683565275, %v1334
    %v1338 = vshrl.u32 2475754826, %v1335
    %v1339 = vor.u32 %v1337, %v1338
    %v1340 = vshll.u32 2475754826, %v1334
    %v1341 = vshrl.u32 2131351028, %v1335
    %v1342 = vor.u32 %v1340, %v1341
    %v1343 = vshll.u32 2131351028, %v1334
    %v1344 = vshrl.u32 2102212464, %v1335
    %v1345 = vor.u32 %v1343, %v1344
    %v1346 = vshll.u32 2102212464, %v1334
    %v1347 = vshrl.u32 920167782, %v1335
    %v1348 = vor.u32 %v1346, %v1347
    %v1349 = vshll.u32 920167782, %v1334
    %v1350 = vshrl.u32 1326507024, %v1335
    %v1351 = vor.u32 %v1349, %v1350
    %vm1352 = vcmp.lt.s32.totalorder %v1333, 1
    %vm1353 = vcmp.lt.s32.totalorder %v1333, 2
    %vm1354 = vcmp.lt.s32.totalorder %v1333, 3
    %vm1355 = vcmp.lt.s32.totalorder %v1333, 4
    %v1356 = vsel %vm1352, %v1336, %v1339
    %v1357 = vsel %vm1355, %v1345, 2102212464
    %v1358 = vsel %vm1354, %v1342, %v1357
    %v1359 = vsel %vm1353, %v1356, %v1358
    %v1360 = vsel %vm1352, %v1339, %v1342
    %v1361 = vsel %vm1355, %v1348, 920167782
    %v1362 = vsel %vm1354, %v1345, %v1361
    %v1363 = vsel %vm1353, %v1360, %v1362
    %v1364 = vsel %vm1352, %v1342, %v1345
    %v1365 = vsel %vm1355, %v1351, 1326507024
    %v1366 = vsel %vm1354, %v1348, %v1365
    %v1367 = vsel %vm1353, %v1364, %v1366
    %v1368 = vshll.u32 %v1328, 8
    %v1369 = vand.u32 %v1368, 65535
    %v1370 = vshrl.u32 %v1368, 16
    %v1371 = vand.u32 %v1367, 65535
    %v1372 = vshrl.u32 %v1367, 16
    %v1373 = vmul.u32 %v1369, %v1371
    %v1374 = vmul.u32 %v1369, %v1372
    %v1375 = vmul.u32 %v1370, %v1371
    %v1376 = vmul.u32 %v1370, %v1372
    %v1377 = vshll.u32 %v1374, 16
    %v1378 = vshrl.u32 %v1374, 16
    %v1379 = vshll.u32 %v1375, 16
    %v1380 = vshrl.u32 %v1375, 16
    %vm1381 = vc.u32 %v1373, %v1377
    %v1382 = vsel %vm1381, 1, 0
    %v1383 = vadd.s32 %v1373, %v1377
    %v1384 = vadd.s32 %v1376, %v1382
    %vm1385 = vc.u32 %v1383, %v1379
    %v1386 = vsel %vm1385, 1, 0
    %v1387 = vadd.s32 %v1383, %v1379
    %v1388 = vadd.s32 %v1384, %v1386
    %v1389 = vadd.s32 %v1388, %v1378
    %v1390 = vadd.s32 %v1389, %v1380
    %v1391 = vand.u32 %v1368, 65535
    %v1392 = vshrl.u32 %v1368, 16
    %v1393 = vand.u32 %v1363, 65535
    %v1394 = vshrl.u32 %v1363, 16
    %v1395 = vmul.u32 %v1391, %v1393
    %v1396 = vmul.u32 %v1391, %v1394
    %v1397 = vmul.u32 %v1392, %v1393
    %v1398 = vmul.u32 %v1392, %v1394
    %v1399 = vshll.u32 %v1396, 16
    %v1400 = vshrl.u32 %v1396, 16
    %v1401 = vshll.u32 %v1397, 16
    %v1402 = vshrl.u32 %v1397, 16
    %vm1403 = vc.u32 %v1395, %v1399
    %v1404 = vsel %vm1403, 1, 0
    %v1405 = vadd.s32 %v1395, %v1399
    %v1406 = vadd.s32 %v1398, %v1404
    %vm1407 = vc.u32 %v1405, %v1401
    %v1408 = vsel %vm1407, 1, 0
    %v1409 = vadd.s32 %v1405, %v1401
    %v1410 = vadd.s32 %v1406, %v1408
    %v1411 = vadd.s32 %v1410, %v1400
    %v1412 = vadd.s32 %v1411, %v1402
    %v1413 = vmul.u32 %v1368, %v1359
    %v1414 = vadd.s32 %v1390, %v1409
    %vm1415 = vc.u32 %v1390, %v1409
    %v1416 = vadd.s32 %v1412, 1
    %v1417 = vsel %vm1415, %v1416, %v1412
    %v1418 = vadd.s32 %v1413, %v1417
    %v1419 = vadd.s32 %v1418, 536870912
    %v1420 = vshrl.u32 %v1419, 30
    %v1421 = vshll.u32 %v1420, 30
    %v1422 = vsub.s32 %v1418, %v1421
    %vm1423 = vcmp.lt.s32.totalorder %v1422, 0
    %v1424 = vsub.s32 0, %v1422
    %v1425 = vsel %vm1423, %v1424, %v1422
    %v1426 = vclz %v1425
    %v1427 = vsub.s32 %v1426, 2
    %vm1428 = vcmp.gt.s32.totalorder 0, %v1427
    %v1429 = vsel %vm1428, 0, %v1427
    %v1430 = vsub.s32 32, %v1429
    %v1431 = vshll.u32 %v1422, %v1429
    %v1432 = vshrl.u32 %v1414, %v1430
    %v1433 = vor.u32 %v1431, %v1432
    %v1434 = vsub.s32 4294967266, %v1429
    %v1435 = vadd.s32 %v1434, 127
    %v1436 = vshll.u32 %v1435, 23
    %v1437 = vor.u32 4788187, %v1436
    %v1438 = vand.u32 2147483647, %v1437
    %v1440 = vcvt.s32.f32 %v1433
    %v1441 = vmul.f32 %v1440, %v1438
    %v1442 = vxor.u32 %v1441, 2147483648
    %v1443 = vsel %vm1322, %v1442, %v1441
    %v1444 = vsub.s32 4, %v1420
    %v1445 = vsel %vm1322, %v1444, %v1420
    %v1446 = vsel %vm1321, %v72, %v1443
    %v1447 = vsel %vm1321, 0, %v1445
    %v1448 = vmul.f32 %v1446, %v1446
    %v1449 = vmul.f32 %v1448, -0.001358992
    %v1450 = vadd.f32 %v1449, 0.041655596
    %v1451 = vmul.f32 %v1448, %v1450
    %v1452 = vadd.f32 %v1451, -0.4999988
    %v1453 = vmul.f32 %v1448, %v1452
    %v1454 = vadd.f32 1.0, %v1453
    %v1455 = vmul.f32 %v1446, %v1446
    %v1456 = vmul.f32 %v1455, -0.00019511016
    %v1457 = vadd.f32 %v1456, 0.008332121
    %v1458 = vmul.f32 %v1455, %v1457
    %v1459 = vadd.f32 %v1458, -0.16666654
    %v1460 = vmul.f32 %v1455, %v1459
    %v1461 = vadd.f32 %v1460, 1.0
    %v1462 = vmul.f32 %v1461, %v1446
    %vm1463 = vweird.f32 %v72
    %v1464 = vadd.s32 %v1447, 3
    %v1465 = vand.u32 %v1464, 3
    %vm1466 = vcmp.lt.s32.totalorder %v1465, 2
    %vm1467 = vcmp.eq.s32.totalorder %v1465, 0
    %v1468 = vxor.u32 %v1462, 2147483648
    %v1469 = vsel %vm1467, %v1454, %v1468
    %vm1470 = vcmp.eq.s32.totalorder %v1465, 2
    %v1471 = vxor.u32 %v1454, 2147483648
    %v1472 = vsel %vm1470, %v1471, %v1462
    %v1473 = vsel %vm1466, %v1469, %v1472
    %v1474 = vsel %vm1463, nan, %v1473
    %v1475 = vand.u32 2147483647, %v73
    %vm1476 = vcmp.le.f32.partialorder %v1475, 0.7853982
    %vm1477 = vcmp.lt.s32.totalorder %v73, 0
    %v1478 = vand.u32 %v73, 2139095040
    %v1479 = vshrl.u32 %v1478, 23
    %v1480 = vsub.s32 %v1479, 127
    %v1481 = vand.u32 2147483647, %v73
    %v1482 = vand.u32 %v1481, 8388607
    %v1483 = vor.u32 %v1482, 8388608
    %v1484 = vsub.s32 0, %v1483
    %v1485 = vadd.s32 %v1480, 1
    %vm1486 = vcmp.gt.s32.totalorder %v1485, 0
    %v1487 = vsel %vm1486, %v1485, 0
    %v1488 = vshrl.u32 %v1487, 5
    %v1489 = vand.u32 %v1487, 31
    %v1490 = vsub.s32 32, %v1489
    %v1491 = vshrl.u32 683565275, %v1490
    %v1492 = vshll.u32 683565275, %v1489
    %v1493 = vshrl.u32 2475754826, %v1490
    %v1494 = vor.u32 %v1492, %v1493
    %v1495 = vshll.u32 2475754826, %v1489
    %v1496 = vshrl.u32 2131351028, %v1490
    %v1497 = vor.u32 %v1495, %v1496
    %v1498 = vshll.u32 2131351028, %v1489
    %v1499 = vshrl.u32 2102212464, %v1490
    %v1500 = vor.u32 %v1498, %v1499
    %v1501 = vshll.u32 2102212464, %v1489
    %v1502 = vshrl.u32 920167782, %v1490
    %v1503 = vor.u32 %v1501, %v1502
    %v1504 = vshll.u32 920167782, %v1489
    %v1505 = vshrl.u32 1326507024, %v1490
    %v1506 = vor.u32 %v1504, %v1505
    %vm1507 = vcmp.lt.s32.totalorder %v1488, 1
    %vm1508 = vcmp.lt.s32.totalorder %v1488, 2
    %vm1509 = vcmp.lt.s32.totalorder %v1488, 3
    %vm1510 = vcmp.lt.s32.totalorder %v1488, 4
    %v1511 = vsel %vm1507, %v1491, %v1494
    %v1512 = vsel %vm1510, %v1500, 2102212464
    %v1513 = vsel %vm1509, %v1497, %v1512
    %v1514 = vsel %vm1508, %v1511, %v1513
    %v1515 = vsel %vm1507, %v1494, %v1497
    %v1516 = vsel %vm1510, %v1503, 920167782
    %v1517 = vsel %vm1509, %v1500, %v1516
    %v1518 = vsel %vm1508, %v1515, %v1517
    %v1519 = vsel %vm1507, %v1497, %v1500
    %v1520 = vsel %vm1510, %v1506, 1326507024
    %v1521 = vsel %vm1509, %v1503, %v1520
    %v1522 = vsel %vm1508, %v1519, %v1521
    %v1523 = vshll.u32 %v1483, 8
    %v1524 = vand.u32 %v1523, 65535
    %v1525 = vshrl.u32 %v1523, 16
    %v1526 = vand.u32 %v1522, 65535
    %v1527 = vshrl.u32 %v1522, 16
    %v1528 = vmul.u32 %v1524, %v1526
    %v1529 = vmul.u32 %v1524, %v1527
    %v1530 = vmul.u32 %v1525, %v1526
    %v1531 = vmul.u32 %v1525, %v1527
    %v1532 = vshll.u32 %v1529, 16
    %v1533 = vshrl.u32 %v1529, 16
    %v1534 = vshll.u32 %v1530, 16
    %v1535 = vshrl.u32 %v1530, 16
    %vm1536 = vc.u32 %v1528, %v1532
    %v1537 = vsel %vm1536, 1, 0
    %v1538 = vadd.s32 %v1528, %v1532
    %v1539 = vadd.s32 %v1531, %v1537
    %vm1540 = vc.u32 %v1538, %v1534
    %v1541 = vsel %vm1540, 1, 0
    %v1542 = vadd.s32 %v1538, %v1534
    %v1543 = vadd.s32 %v1539, %v1541
    %v1544 = vadd.s32 %v1543, %v1533
    %v1545 = vadd.s32 %v1544, %v1535
    %v1546 = vand.u32 %v1523, 65535
    %v1547 = vshrl.u32 %v1523, 16
    %v1548 = vand.u32 %v1518, 65535
    %v1549 = vshrl.u32 %v1518, 16
    %v1550 = vmul.u32 %v1546, %v1548
    %v1551 = vmul.u32 %v1546, %v1549
    %v1552 = vmul.u32 %v1547, %v1548
    %v1553 = vmul.u32 %v1547, %v1549
    %v1554 = vshll.u32 %v1551, 16
    %v1555 = vshrl.u32 %v1551, 16
    %v1556 = vshll.u32 %v1552, 16
    %v1557 = vshrl.u32 %v1552, 16
    %vm1558 = vc.u32 %v1550, %v1554
    %v1559 = vsel %vm1558, 1, 0
    %v1560 = vadd.s32 %v1550, %v1554
    %v1561 = vadd.s32 %v1553, %v1559
    %vm1562 = vc.u32 %v1560, %v1556
    %v1563 = vsel %vm1562, 1, 0
    %v1564 = vadd.s32 %v1560, %v1556
    %v1565 = vadd.s32 %v1561, %v1563
    %v1566 = vadd.s32 %v1565, %v1555
    %v1567 = vadd.s32 %v1566, %v1557
    %v1568 = vmul.u32 %v1523, %v1514
    %v1569 = vadd.s32 %v1545, %v1564
    %vm1570 = vc.u32 %v1545, %v1564
    %v1571 = vadd.s32 %v1567, 1
    %v1572 = vsel %vm1570, %v1571, %v1567
    %v1573 = vadd.s32 %v1568, %v1572
    %v1574 = vadd.s32 %v1573, 536870912
    %v1575 = vshrl.u32 %v1574, 30
    %v1576 = vshll.u32 %v1575, 30
    %v1577 = vsub.s32 %v1573, %v1576
    %vm1578 = vcmp.lt.s32.totalorder %v1577, 0
    %v1579 = vsub.s32 0, %v1577
    %v1580 = vsel %vm1578, %v1579, %v1577
    %v1581 = vclz %v1580
    %v1582 = vsub.s32 %v1581, 2
    %vm1583 = vcmp.gt.s32.totalorder 0, %v1582
    %v1584 = vsel %vm1583, 0, %v1582
    %v1585 = vsub.s32 32, %v1584
    %v1586 = vshll.u32 %v1577, %v1584
    %v1587 = vshrl.u32 %v1569, %v1585
    %v1588 = vor.u32 %v1586, %v1587
    %v1589 = vsub.s32 4294967266, %v1584
    %v1590 = vadd.s32 %v1589, 127
    %v1591 = vshll.u32 %v1590, 23
    %v1592 = vor.u32 4788187, %v1591
    %v1593 = vand.u32 2147483647, %v1592
    %v1595 = vcvt.s32.f32 %v1588
    %v1596 = vmul.f32 %v1595, %v1593
    %v1597 = vxor.u32 %v1596, 2147483648
    %v1598 = vsel %vm1477, %v1597, %v1596
    %v1599 = vsub.s32 4, %v1575
    %v1600 = vsel %vm1477, %v1599, %v1575
    %v1601 = vsel %vm1476, %v73, %v1598
    %v1602 = vsel %vm1476, 0, %v1600
    %v1603 = vmul.f32 %v1601, %v1601
    %v1604 = vmul.f32 %v1603, -0.001358992
    %v1605 = vadd.f32 %v1604, 0.041655596
    %v1606 = vmul.f32 %v1603, %v1605
    %v1607 = vadd.f32 %v1606, -0.4999988
    %v1608 = vmul.f32 %v1603, %v1607
    %v1609 = vadd.f32 1.0, %v1608
    %v1610 = vmul.f32 %v1601, %v1601
    %v1611 = vmul.f32 %v1610, -0.00019511016
    %v1612 = vadd.f32 %v1611, 0.008332121
    %v1613 = vmul.f32 %v1610, %v1612
    %v1614 = vadd.f32 %v1613, -0.16666654
    %v1615 = vmul.f32 %v1610, %v1614
    %v1616 = vadd.f32 %v1615, 1.0
    %v1617 = vmul.f32 %v1616, %v1601
    %vm1618 = vweird.f32 %v73
    %v1619 = vadd.s32 %v1602, 3
    %v1620 = vand.u32 %v1619, 3
    %vm1621 = vcmp.lt.s32.totalorder %v1620, 2
    %vm1622 = vcmp.eq.s32.totalorder %v1620, 0
    %v1623 = vxor.u32 %v1617, 2147483648
    %v1624 = vsel %vm1622, %v1609, %v1623
    %vm1625 = vcmp.eq.s32.totalorder %v1620, 2
    %v1626 = vxor.u32 %v1609, 2147483648
    %v1627 = vsel %vm1625, %v1626, %v1617
    %v1628 = vsel %vm1621, %v1624, %v1627
    %v1629 = vsel %vm1618, nan, %v1628
    %v1630 = vand.u32 2147483647, %v74
    %vm1631 = vcmp.le.f32.partialorder %v1630, 0.7853982
    %vm1632 = vcmp.lt.s32.totalorder %v74, 0
    %v1633 = vand.u32 %v74, 2139095040
    %v1634 = vshrl.u32 %v1633, 23
    %v1635 = vsub.s32 %v1634, 127
    %v1636 = vand.u32 2147483647, %v74
    %v1637 = vand.u32 %v1636, 8388607
    %v1638 = vor.u32 %v1637, 8388608
    %v1639 = vsub.s32 0, %v1638
    %v1640 = vadd.s32 %v1635, 1
    %vm1641 = vcmp.gt.s32.totalorder %v1640, 0
    %v1642 = vsel %vm1641, %v1640, 0
    %v1643 = vshrl.u32 %v1642, 5
    %v1644 = vand.u32 %v1642, 31
    %v1645 = vsub.s32 32, %v1644
    %v1646 = vshrl.u32 683565275, %v1645
    %v1647 = vshll.u32 683565275, %v1644
    %v1648 = vshrl.u32 2475754826, %v1645
    %v1649 = vor.u32 %v1647, %v1648
    %v1650 = vshll.u32 2475754826, %v1644
    %v1651 = vshrl.u32 2131351028, %v1645
    %v1652 = vor.u32 %v1650, %v1651
    %v1653 = vshll.u32 2131351028, %v1644
    %v1654 = vshrl.u32 2102212464, %v1645
    %v1655 = vor.u32 %v1653, %v1654
    %v1656 = vshll.u32 2102212464, %v1644
    %v1657 = vshrl.u32 920167782, %v1645
    %v1658 = vor.u32 %v1656, %v1657
    %v1659 = vshll.u32 920167782, %v1644
    %v1660 = vshrl.u32 1326507024, %v1645
    %v1661 = vor.u32 %v1659, %v1660
    %vm1662 = vcmp.lt.s32.totalorder %v1643, 1
    %vm1663 = vcmp.lt.s32.totalorder %v1643, 2
    %vm1664 = vcmp.lt.s32.totalorder %v1643, 3
    %vm1665 = vcmp.lt.s32.totalorder %v1643, 4
    %v1666 = vsel %vm1662, %v1646, %v1649
    %v1667 = vsel %vm1665, %v1655, 2102212464
    %v1668 = vsel %vm1664, %v1652, %v1667
    %v1669 = vsel %vm1663, %v1666, %v1668
    %v1670 = vsel %vm1662, %v1649, %v1652
    %v1671 = vsel %vm1665, %v1658, 920167782
    %v1672 = vsel %vm1664, %v1655, %v1671
    %v1673 = vsel %vm1663, %v1670, %v1672
    %v1674 = vsel %vm1662, %v1652, %v1655
    %v1675 = vsel %vm1665, %v1661, 1326507024
    %v1676 = vsel %vm1664, %v1658, %v1675
    %v1677 = vsel %vm1663, %v1674, %v1676
    %v1678 = vshll.u32 %v1638, 8
    %v1679 = vand.u32 %v1678, 65535
    %v1680 = vshrl.u32 %v1678, 16
    %v1681 = vand.u32 %v1677, 65535
    %v1682 = vshrl.u32 %v1677, 16
    %v1683 = vmul.u32 %v1679, %v1681
    %v1684 = vmul.u32 %v1679, %v1682
    %v1685 = vmul.u32 %v1680, %v1681
    %v1686 = vmul.u32 %v1680, %v1682
    %v1687 = vshll.u32 %v1684, 16
    %v1688 = vshrl.u32 %v1684, 16
    %v1689 = vshll.u32 %v1685, 16
    %v1690 = vshrl.u32 %v1685, 16
    %vm1691 = vc.u32 %v1683, %v1687
    %v1692 = vsel %vm1691, 1, 0
    %v1693 = vadd.s32 %v1683, %v1687
    %v1694 = vadd.s32 %v1686, %v1692
    %vm1695 = vc.u32 %v1693, %v1689
    %v1696 = vsel %vm1695, 1, 0
    %v1697 = vadd.s32 %v1693, %v1689
    %v1698 = vadd.s32 %v1694, %v1696
    %v1699 = vadd.s32 %v1698, %v1688
    %v1700 = vadd.s32 %v1699, %v1690
    %v1701 = vand.u32 %v1678, 65535
    %v1702 = vshrl.u32 %v1678, 16
    %v1703 = vand.u32 %v1673, 65535
    %v1704 = vshrl.u32 %v1673, 16
    %v1705 = vmul.u32 %v1701, %v1703
    %v1706 = vmul.u32 %v1701, %v1704
    %v1707 = vmul.u32 %v1702, %v1703
    %v1708 = vmul.u32 %v1702, %v1704
    %v1709 = vshll.u32 %v1706, 16
    %v1710 = vshrl.u32 %v1706, 16
    %v1711 = vshll.u32 %v1707, 16
    %v1712 = vshrl.u32 %v1707, 16
    %vm1713 = vc.u32 %v1705, %v1709
    %v1714 = vsel %vm1713, 1, 0
    %v1715 = vadd.s32 %v1705, %v1709
    %v1716 = vadd.s32 %v1708, %v1714
    %vm1717 = vc.u32 %v1715, %v1711
    %v1718 = vsel %vm1717, 1, 0
    %v1719 = vadd.s32 %v1715, %v1711
    %v1720 = vadd.s32 %v1716, %v1718
    %v1721 = vadd.s32 %v1720, %v1710
    %v1722 = vadd.s32 %v1721, %v1712
    %v1723 = vmul.u32 %v1678, %v1669
    %v1724 = vadd.s32 %v1700, %v1719
    %vm1725 = vc.u32 %v1700, %v1719
    %v1726 = vadd.s32 %v1722, 1
    %v1727 = vsel %vm1725, %v1726, %v1722
    %v1728 = vadd.s32 %v1723, %v1727
    %v1729 = vadd.s32 %v1728, 536870912
    %v1730 = vshrl.u32 %v1729, 30
    %v1731 = vshll.u32 %v1730, 30
    %v1732 = vsub.s32 %v1728, %v1731
    %vm1733 = vcmp.lt.s32.totalorder %v1732, 0
    %v1734 = vsub.s32 0, %v1732
    %v1735 = vsel %vm1733, %v1734, %v1732
    %v1736 = vclz %v1735
    %v1737 = vsub.s32 %v1736, 2
    %vm1738 = vcmp.gt.s32.totalorder 0, %v1737
    %v1739 = vsel %vm1738, 0, %v1737
    %v1740 = vsub.s32 32, %v1739
    %v1741 = vshll.u32 %v1732, %v1739
    %v1742 = vshrl.u32 %v1724, %v1740
    %v1743 = vor.u32 %v1741, %v1742
    %v1744 = vsub.s32 4294967266, %v1739
    %v1745 = vadd.s32 %v1744, 127
    %v1746 = vshll.u32 %v1745, 23
    %v1747 = vor.u32 4788187, %v1746
    %v1748 = vand.u32 2147483647, %v1747
    %v1750 = vcvt.s32.f32 %v1743
    %v1751 = vmul.f32 %v1750, %v1748
    %v1752 = vxor.u32 %v1751, 2147483648
    %v1753 = vsel %vm1632, %v1752, %v1751
    %v1754 = vsub.s32 4, %v1730
    %v1755 = vsel %vm1632, %v1754, %v1730
    %v1756 = vsel %vm1631, %v74, %v1753
    %v1757 = vsel %vm1631, 0, %v1755
    %v1758 = vmul.f32 %v1756, %v1756
    %v1759 = vmul.f32 %v1758, -0.001358992
    %v1760 = vadd.f32 %v1759, 0.041655596
    %v1761 = vmul.f32 %v1758, %v1760
    %v1762 = vadd.f32 %v1761, -0.4999988
    %v1763 = vmul.f32 %v1758, %v1762
    %v1764 = vadd.f32 1.0, %v1763
    %v1765 = vmul.f32 %v1756, %v1756
    %v1766 = vmul.f32 %v1765, -0.00019511016
    %v1767 = vadd.f32 %v1766, 0.008332121
    %v1768 = vmul.f32 %v1765, %v1767
    %v1769 = vadd.f32 %v1768, -0.16666654
    %v1770 = vmul.f32 %v1765, %v1769
    %v1771 = vadd.f32 %v1770, 1.0
    %v1772 = vmul.f32 %v1771, %v1756
    %vm1773 = vweird.f32 %v74
    %v1774 = vadd.s32 %v1757, 3
    %v1775 = vand.u32 %v1774, 3
    %vm1776 = vcmp.lt.s32.totalorder %v1775, 2
    %vm1777 = vcmp.eq.s32.totalorder %v1775, 0
    %v1778 = vxor.u32 %v1772, 2147483648
    %v1779 = vsel %vm1777, %v1764, %v1778
    %vm1780 = vcmp.eq.s32.totalorder %v1775, 2
    %v1781 = vxor.u32 %v1764, 2147483648
    %v1782 = vsel %vm1780, %v1781, %v1772
    %v1783 = vsel %vm1776, %v1779, %v1782
    %v1784 = vsel %vm1773, nan, %v1783
    %v1785 = vand.u32 2147483647, %v75
    %vm1786 = vcmp.le.f32.partialorder %v1785, 0.7853982
    %vm1787 = vcmp.lt.s32.totalorder %v75, 0
    %v1788 = vand.u32 %v75, 2139095040
    %v1789 = vshrl.u32 %v1788, 23
    %v1790 = vsub.s32 %v1789, 127
    %v1791 = vand.u32 2147483647, %v75
    %v1792 = vand.u32 %v1791, 8388607
    %v1793 = vor.u32 %v1792, 8388608
    %v1794 = vsub.s32 0, %v1793
    %v1795 = vadd.s32 %v1790, 1
    %vm1796 = vcmp.gt.s32.totalorder %v1795, 0
    %v1797 = vsel %vm1796, %v1795, 0
    %v1798 = vshrl.u32 %v1797, 5
    %v1799 = vand.u32 %v1797, 31
    %v1800 = vsub.s32 32, %v1799
    %v1801 = vshrl.u32 683565275, %v1800
    %v1802 = vshll.u32 683565275, %v1799
    %v1803 = vshrl.u32 2475754826, %v1800
    %v1804 = vor.u32 %v1802, %v1803
    %v1805 = vshll.u32 2475754826, %v1799
    %v1806 = vshrl.u32 2131351028, %v1800
    %v1807 = vor.u32 %v1805, %v1806
    %v1808 = vshll.u32 2131351028, %v1799
    %v1809 = vshrl.u32 2102212464, %v1800
    %v1810 = vor.u32 %v1808, %v1809
    %v1811 = vshll.u32 2102212464, %v1799
    %v1812 = vshrl.u32 920167782, %v1800
    %v1813 = vor.u32 %v1811, %v1812
    %v1814 = vshll.u32 920167782, %v1799
    %v1815 = vshrl.u32 1326507024, %v1800
    %v1816 = vor.u32 %v1814, %v1815
    %vm1817 = vcmp.lt.s32.totalorder %v1798, 1
    %vm1818 = vcmp.lt.s32.totalorder %v1798, 2
    %vm1819 = vcmp.lt.s32.totalorder %v1798, 3
    %vm1820 = vcmp.lt.s32.totalorder %v1798, 4
    %v1821 = vsel %vm1817, %v1801, %v1804
    %v1822 = vsel %vm1820, %v1810, 2102212464
    %v1823 = vsel %vm1819, %v1807, %v1822
    %v1824 = vsel %vm1818, %v1821, %v1823
    %v1825 = vsel %vm1817, %v1804, %v1807
    %v1826 = vsel %vm1820, %v1813, 920167782
    %v1827 = vsel %vm1819, %v1810, %v1826
    %v1828 = vsel %vm1818, %v1825, %v1827
    %v1829 = vsel %vm1817, %v1807, %v1810
    %v1830 = vsel %vm1820, %v1816, 1326507024
    %v1831 = vsel %vm1819, %v1813, %v1830
    %v1832 = vsel %vm1818, %v1829, %v1831
    %v1833 = vshll.u32 %v1793, 8
    %v1834 = vand.u32 %v1833, 65535
    %v1835 = vshrl.u32 %v1833, 16
    %v1836 = vand.u32 %v1832, 65535
    %v1837 = vshrl.u32 %v1832, 16
    %v1838 = vmul.u32 %v1834, %v1836
    %v1839 = vmul.u32 %v1834, %v1837
    %v1840 = vmul.u32 %v1835, %v1836
    %v1841 = vmul.u32 %v1835, %v1837
    %v1842 = vshll.u32 %v1839, 16
    %v1843 = vshrl.u32 %v1839, 16
    %v1844 = vshll.u32 %v1840, 16
    %v1845 = vshrl.u32 %v1840, 16
    %vm1846 = vc.u32 %v1838, %v1842
    %v1847 = vsel %vm1846, 1, 0
    %v1848 = vadd.s32 %v1838, %v1842
    %v1849 = vadd.s32 %v1841, %v1847
    %vm1850 = vc.u32 %v1848, %v1844
    %v1851 = vsel %vm1850, 1, 0
    %v1852 = vadd.s32 %v1848, %v1844
    %v1853 = vadd.s32 %v1849, %v1851
    %v1854 = vadd.s32 %v1853, %v1843
    %v1855 = vadd.s32 %v1854, %v1845
    %v1856 = vand.u32 %v1833, 65535
    %v1857 = vshrl.u32 %v1833, 16
    %v1858 = vand.u32 %v1828, 65535
    %v1859 = vshrl.u32 %v1828, 16
    %v1860 = vmul.u32 %v1856, %v1858
    %v1861 = vmul.u32 %v1856, %v1859
    %v1862 = vmul.u32 %v1857, %v1858
    %v1863 = vmul.u32 %v1857, %v1859
    %v1864 = vshll.u32 %v1861, 16
    %v1865 = vshrl.u32 %v1861, 16
    %v1866 = vshll.u32 %v1862, 16
    %v1867 = vshrl.u32 %v1862, 16
    %vm1868 = vc.u32 %v1860, %v1864
    %v1869 = vsel %vm1868, 1, 0
    %v1870 = vadd.s32 %v1860, %v1864
    %v1871 = vadd.s32 %v1863, %v1869
    %vm1872 = vc.u32 %v1870, %v1866
    %v1873 = vsel %vm1872, 1, 0
    %v1874 = vadd.s32 %v1870, %v1866
    %v1875 = vadd.s32 %v1871, %v1873
    %v1876 = vadd.s32 %v1875, %v1865
    %v1877 = vadd.s32 %v1876, %v1867
    %v1878 = vmul.u32 %v1833, %v1824
    %v1879 = vadd.s32 %v1855, %v1874
    %vm1880 = vc.u32 %v1855, %v1874
    %v1881 = vadd.s32 %v1877, 1
    %v1882 = vsel %vm1880, %v1881, %v1877
    %v1883 = vadd.s32 %v1878, %v1882
    %v1884 = vadd.s32 %v1883, 536870912
    %v1885 = vshrl.u32 %v1884, 30
    %v1886 = vshll.u32 %v1885, 30
    %v1887 = vsub.s32 %v1883, %v1886
    %vm1888 = vcmp.lt.s32.totalorder %v1887, 0
    %v1889 = vsub.s32 0, %v1887
    %v1890 = vsel %vm1888, %v1889, %v1887
    %v1891 = vclz %v1890
    %v1892 = vsub.s32 %v1891, 2
    %vm1893 = vcmp.gt.s32.totalorder 0, %v1892
    %v1894 = vsel %vm1893, 0, %v1892
    %v1895 = vsub.s32 32, %v1894
    %v1896 = vshll.u32 %v1887, %v1894
    %v1897 = vshrl.u32 %v1879, %v1895
    %v1898 = vor.u32 %v1896, %v1897
    %v1899 = vsub.s32 4294967266, %v1894
    %v1900 = vadd.s32 %v1899, 127
    %v1901 = vshll.u32 %v1900, 23
    %v1902 = vor.u32 4788187, %v1901
    %v1903 = vand.u32 2147483647, %v1902
    %v1905 = vcvt.s32.f32 %v1898
    %v1906 = vmul.f32 %v1905, %v1903
    %v1907 = vxor.u32 %v1906, 2147483648
    %v1908 = vsel %vm1787, %v1907, %v1906
    %v1909 = vsub.s32 4, %v1885
    %v1910 = vsel %vm1787, %v1909, %v1885
    %v1911 = vsel %vm1786, %v75, %v1908
    %v1912 = vsel %vm1786, 0, %v1910
    %v1913 = vmul.f32 %v1911, %v1911
    %v1914 = vmul.f32 %v1913, -0.001358992
    %v1915 = vadd.f32 %v1914, 0.041655596
    %v1916 = vmul.f32 %v1913, %v1915
    %v1917 = vadd.f32 %v1916, -0.4999988
    %v1918 = vmul.f32 %v1913, %v1917
    %v1919 = vadd.f32 1.0, %v1918
    %v1920 = vmul.f32 %v1911, %v1911
    %v1921 = vmul.f32 %v1920, -0.00019511016
    %v1922 = vadd.f32 %v1921, 0.008332121
    %v1923 = vmul.f32 %v1920, %v1922
    %v1924 = vadd.f32 %v1923, -0.16666654
    %v1925 = vmul.f32 %v1920, %v1924
    %v1926 = vadd.f32 %v1925, 1.0
    %v1927 = vmul.f32 %v1926, %v1911
    %vm1928 = vweird.f32 %v75
    %v1929 = vadd.s32 %v1912, 3
    %v1930 = vand.u32 %v1929, 3
    %vm1931 = vcmp.lt.s32.totalorder %v1930, 2
    %vm1932 = vcmp.eq.s32.totalorder %v1930, 0
    %v1933 = vxor.u32 %v1927, 2147483648
    %v1934 = vsel %vm1932, %v1919, %v1933
    %vm1935 = vcmp.eq.s32.totalorder %v1930, 2
    %v1936 = vxor.u32 %v1919, 2147483648
    %v1937 = vsel %vm1935, %v1936, %v1927
    %v1938 = vsel %vm1931, %v1934, %v1937
    %v1939 = vsel %vm1928, nan, %v1938
    %v1940 = vand.u32 2147483647, %v76
    %vm1941 = vcmp.le.f32.partialorder %v1940, 0.7853982
    %vm1942 = vcmp.lt.s32.totalorder %v76, 0
    %v1943 = vand.u32 %v76, 2139095040
    %v1944 = vshrl.u32 %v1943, 23
    %v1945 = vsub.s32 %v1944, 127
    %v1946 = vand.u32 2147483647, %v76
    %v1947 = vand.u32 %v1946, 8388607
    %v1948 = vor.u32 %v1947, 8388608
    %v1949 = vsub.s32 0, %v1948
    %v1950 = vadd.s32 %v1945, 1
    %vm1951 = vcmp.gt.s32.totalorder %v1950, 0
    %v1952 = vsel %vm1951, %v1950, 0
    %v1953 = vshrl.u32 %v1952, 5
    %v1954 = vand.u32 %v1952, 31
    %v1955 = vsub.s32 32, %v1954
    %v1956 = vshrl.u32 683565275, %v1955
    %v1957 = vshll.u32 683565275, %v1954
    %v1958 = vshrl.u32 2475754826, %v1955
    %v1959 = vor.u32 %v1957, %v1958
    %v1960 = vshll.u32 2475754826, %v1954
    %v1961 = vshrl.u32 2131351028, %v1955
    %v1962 = vor.u32 %v1960, %v1961
    %v1963 = vshll.u32 2131351028, %v1954
    %v1964 = vshrl.u32 2102212464, %v1955
    %v1965 = vor.u32 %v1963, %v1964
    %v1966 = vshll.u32 2102212464, %v1954
    %v1967 = vshrl.u32 920167782, %v1955
    %v1968 = vor.u32 %v1966, %v1967
    %v1969 = vshll.u32 920167782, %v1954
    %v1970 = vshrl.u32 1326507024, %v1955
    %v1971 = vor.u32 %v1969, %v1970
    %vm1972 = vcmp.lt.s32.totalorder %v1953, 1
    %vm1973 = vcmp.lt.s32.totalorder %v1953, 2
    %vm1974 = vcmp.lt.s32.totalorder %v1953, 3
    %vm1975 = vcmp.lt.s32.totalorder %v1953, 4
    %v1976 = vsel %vm1972, %v1956, %v1959
    %v1977 = vsel %vm1975, %v1965, 2102212464
    %v1978 = vsel %vm1974, %v1962, %v1977
    %v1979 = vsel %vm1973, %v1976, %v1978
    %v1980 = vsel %vm1972, %v1959, %v1962
    %v1981 = vsel %vm1975, %v1968, 920167782
    %v1982 = vsel %vm1974, %v1965, %v1981
    %v1983 = vsel %vm1973, %v1980, %v1982
    %v1984 = vsel %vm1972, %v1962, %v1965
    %v1985 = vsel %vm1975, %v1971, 1326507024
    %v1986 = vsel %vm1974, %v1968, %v1985
    %v1987 = vsel %vm1973, %v1984, %v1986
    %v1988 = vshll.u32 %v1948, 8
    %v1989 = vand.u32 %v1988, 65535
    %v1990 = vshrl.u32 %v1988, 16
    %v1991 = vand.u32 %v1987, 65535
    %v1992 = vshrl.u32 %v1987, 16
    %v1993 = vmul.u32 %v1989, %v1991
    %v1994 = vmul.u32 %v1989, %v1992
    %v1995 = vmul.u32 %v1990, %v1991
    %v1996 = vmul.u32 %v1990, %v1992
    %v1997 = vshll.u32 %v1994, 16
    %v1998 = vshrl.u32 %v1994, 16
    %v1999 = vshll.u32 %v1995, 16
    %v2000 = vshrl.u32 %v1995, 16
    %vm2001 = vc.u32 %v1993, %v1997
    %v2002 = vsel %vm2001, 1, 0
    %v2003 = vadd.s32 %v1993, %v1997
    %v2004 = vadd.s32 %v1996, %v2002
    %vm2005 = vc.u32 %v2003, %v1999
    %v2006 = vsel %vm2005, 1, 0
    %v2007 = vadd.s32 %v2003, %v1999
    %v2008 = vadd.s32 %v2004, %v2006
    %v2009 = vadd.s32 %v2008, %v1998
    %v2010 = vadd.s32 %v2009, %v2000
    %v2011 = vand.u32 %v1988, 65535
    %v2012 = vshrl.u32 %v1988, 16
    %v2013 = vand.u32 %v1983, 65535
    %v2014 = vshrl.u32 %v1983, 16
    %v2015 = vmul.u32 %v2011, %v2013
    %v2016 = vmul.u32 %v2011, %v2014
    %v2017 = vmul.u32 %v2012, %v2013
    %v2018 = vmul.u32 %v2012, %v2014
    %v2019 = vshll.u32 %v2016, 16
    %v2020 = vshrl.u32 %v2016, 16
    %v2021 = vshll.u32 %v2017, 16
    %v2022 = vshrl.u32 %v2017, 16
    %vm2023 = vc.u32 %v2015, %v2019
    %v2024 = vsel %vm2023, 1, 0
    %v2025 = vadd.s32 %v2015, %v2019
    %v2026 = vadd.s32 %v2018, %v2024
    %vm2027 = vc.u32 %v2025, %v2021
    %v2028 = vsel %vm2027, 1, 0
    %v2029 = vadd.s32 %v2025, %v2021
    %v2030 = vadd.s32 %v2026, %v2028
    %v2031 = vadd.s32 %v2030, %v2020
    %v2032 = vadd.s32 %v2031, %v2022
    %v2033 = vmul.u32 %v1988, %v1979
    %v2034 = vadd.s32 %v2010, %v2029
    %vm2035 = vc.u32 %v2010, %v2029
    %v2036 = vadd.s32 %v2032, 1
    %v2037 = vsel %vm2035, %v2036, %v2032
    %v2038 = vadd.s32 %v2033, %v2037
    %v2039 = vadd.s32 %v2038, 536870912
    %v2040 = vshrl.u32 %v2039, 30
    %v2041 = vshll.u32 %v2040, 30
    %v2042 = vsub.s32 %v2038, %v2041
    %vm2043 = vcmp.lt.s32.totalorder %v2042, 0
    %v2044 = vsub.s32 0, %v2042
    %v2045 = vsel %vm2043, %v2044, %v2042
    %v2046 = vclz %v2045
    %v2047 = vsub.s32 %v2046, 2
    %vm2048 = vcmp.gt.s32.totalorder 0, %v2047
    %v2049 = vsel %vm2048, 0, %v2047
    %v2050 = vsub.s32 32, %v2049
    %v2051 = vshll.u32 %v2042, %v2049
    %v2052 = vshrl.u32 %v2034, %v2050
    %v2053 = vor.u32 %v2051, %v2052
    %v2054 = vsub.s32 4294967266, %v2049
    %v2055 = vadd.s32 %v2054, 127
    %v2056 = vshll.u32 %v2055, 23
    %v2057 = vor.u32 4788187, %v2056
    %v2058 = vand.u32 2147483647, %v2057
    %v2060 = vcvt.s32.f32 %v2053
    %v2061 = vmul.f32 %v2060, %v2058
    %v2062 = vxor.u32 %v2061, 2147483648
    %v2063 = vsel %vm1942, %v2062, %v2061
    %v2064 = vsub.s32 4, %v2040
    %v2065 = vsel %vm1942, %v2064, %v2040
    %v2066 = vsel %vm1941, %v76, %v2063
    %v2067 = vsel %vm1941, 0, %v2065
    %v2068 = vmul.f32 %v2066, %v2066
    %v2069 = vmul.f32 %v2068, -0.001358992
    %v2070 = vadd.f32 %v2069, 0.041655596
    %v2071 = vmul.f32 %v2068, %v2070
    %v2072 = vadd.f32 %v2071, -0.4999988
    %v2073 = vmul.f32 %v2068, %v2072
    %v2074 = vadd.f32 1.0, %v2073
    %v2075 = vmul.f32 %v2066, %v2066
    %v2076 = vmul.f32 %v2075, -0.00019511016
    %v2077 = vadd.f32 %v2076, 0.008332121
    %v2078 = vmul.f32 %v2075, %v2077
    %v2079 = vadd.f32 %v2078, -0.16666654
    %v2080 = vmul.f32 %v2075, %v2079
    %v2081 = vadd.f32 %v2080, 1.0
    %v2082 = vmul.f32 %v2081, %v2066
    %vm2083 = vweird.f32 %v76
    %v2084 = vadd.s32 %v2067, 3
    %v2085 = vand.u32 %v2084, 3
    %vm2086 = vcmp.lt.s32.totalorder %v2085, 2
    %vm2087 = vcmp.eq.s32.totalorder %v2085, 0
    %v2088 = vxor.u32 %v2082, 2147483648
    %v2089 = vsel %vm2087, %v2074, %v2088
    %vm2090 = vcmp.eq.s32.totalorder %v2085, 2
    %v2091 = vxor.u32 %v2074, 2147483648
    %v2092 = vsel %vm2090, %v2091, %v2082
    %v2093 = vsel %vm2086, %v2089, %v2092
    %v2094 = vsel %vm2083, nan, %v2093
    %v2095 = vand.u32 2147483647, %v77
    %vm2096 = vcmp.le.f32.partialorder %v2095, 0.7853982
    %vm2097 = vcmp.lt.s32.totalorder %v77, 0
    %v2098 = vand.u32 %v77, 2139095040
    %v2099 = vshrl.u32 %v2098, 23
    %v2100 = vsub.s32 %v2099, 127
    %v2101 = vand.u32 2147483647, %v77
    %v2102 = vand.u32 %v2101, 8388607
    %v2103 = vor.u32 %v2102, 8388608
    %v2104 = vsub.s32 0, %v2103
    %v2105 = vadd.s32 %v2100, 1
    %vm2106 = vcmp.gt.s32.totalorder %v2105, 0
    %v2107 = vsel %vm2106, %v2105, 0
    %v2108 = vshrl.u32 %v2107, 5
    %v2109 = vand.u32 %v2107, 31
    %v2110 = vsub.s32 32, %v2109
    %v2111 = vshrl.u32 683565275, %v2110
    %v2112 = vshll.u32 683565275, %v2109
    %v2113 = vshrl.u32 2475754826, %v2110
    %v2114 = vor.u32 %v2112, %v2113
    %v2115 = vshll.u32 2475754826, %v2109
    %v2116 = vshrl.u32 2131351028, %v2110
    %v2117 = vor.u32 %v2115, %v2116
    %v2118 = vshll.u32 2131351028, %v2109
    %v2119 = vshrl.u32 2102212464, %v2110
    %v2120 = vor.u32 %v2118, %v2119
    %v2121 = vshll.u32 2102212464, %v2109
    %v2122 = vshrl.u32 920167782, %v2110
    %v2123 = vor.u32 %v2121, %v2122
    %v2124 = vshll.u32 920167782, %v2109
    %v2125 = vshrl.u32 1326507024, %v2110
    %v2126 = vor.u32 %v2124, %v2125
    %vm2127 = vcmp.lt.s32.totalorder %v2108, 1
    %vm2128 = vcmp.lt.s32.totalorder %v2108, 2
    %vm2129 = vcmp.lt.s32.totalorder %v2108, 3
    %vm2130 = vcmp.lt.s32.totalorder %v2108, 4
    %v2131 = vsel %vm2127, %v2111, %v2114
    %v2132 = vsel %vm2130, %v2120, 2102212464
    %v2133 = vsel %vm2129, %v2117, %v2132
    %v2134 = vsel %vm2128, %v2131, %v2133
    %v2135 = vsel %vm2127, %v2114, %v2117
    %v2136 = vsel %vm2130, %v2123, 920167782
    %v2137 = vsel %vm2129, %v2120, %v2136
    %v2138 = vsel %vm2128, %v2135, %v2137
    %v2139 = vsel %vm2127, %v2117, %v2120
    %v2140 = vsel %vm2130, %v2126, 1326507024
    %v2141 = vsel %vm2129, %v2123, %v2140
    %v2142 = vsel %vm2128, %v2139, %v2141
    %v2143 = vshll.u32 %v2103, 8
    %v2144 = vand.u32 %v2143, 65535
    %v2145 = vshrl.u32 %v2143, 16
    %v2146 = vand.u32 %v2142, 65535
    %v2147 = vshrl.u32 %v2142, 16
    %v2148 = vmul.u32 %v2144, %v2146
    %v2149 = vmul.u32 %v2144, %v2147
    %v2150 = vmul.u32 %v2145, %v2146
    %v2151 = vmul.u32 %v2145, %v2147
    %v2152 = vshll.u32 %v2149, 16
    %v2153 = vshrl.u32 %v2149, 16
    %v2154 = vshll.u32 %v2150, 16
    %v2155 = vshrl.u32 %v2150, 16
    %vm2156 = vc.u32 %v2148, %v2152
    %v2157 = vsel %vm2156, 1, 0
    %v2158 = vadd.s32 %v2148, %v2152
    %v2159 = vadd.s32 %v2151, %v2157
    %vm2160 = vc.u32 %v2158, %v2154
    %v2161 = vsel %vm2160, 1, 0
    %v2162 = vadd.s32 %v2158, %v2154
    %v2163 = vadd.s32 %v2159, %v2161
    %v2164 = vadd.s32 %v2163, %v2153
    %v2165 = vadd.s32 %v2164, %v2155
    %v2166 = vand.u32 %v2143, 65535
    %v2167 = vshrl.u32 %v2143, 16
    %v2168 = vand.u32 %v2138, 65535
    %v2169 = vshrl.u32 %v2138, 16
    %v2170 = vmul.u32 %v2166, %v2168
    %v2171 = vmul.u32 %v2166, %v2169
    %v2172 = vmul.u32 %v2167, %v2168
    %v2173 = vmul.u32 %v2167, %v2169
    %v2174 = vshll.u32 %v2171, 16
    %v2175 = vshrl.u32 %v2171, 16
    %v2176 = vshll.u32 %v2172, 16
    %v2177 = vshrl.u32 %v2172, 16
    %vm2178 = vc.u32 %v2170, %v2174
    %v2179 = vsel %vm2178, 1, 0
    %v2180 = vadd.s32 %v2170, %v2174
    %v2181 = vadd.s32 %v2173, %v2179
    %vm2182 = vc.u32 %v2180, %v2176
    %v2183 = vsel %vm2182, 1, 0
    %v2184 = vadd.s32 %v2180, %v2176
    %v2185 = vadd.s32 %v2181, %v2183
    %v2186 = vadd.s32 %v2185, %v2175
    %v2187 = vadd.s32 %v2186, %v2177
    %v2188 = vmul.u32 %v2143, %v2134
    %v2189 = vadd.s32 %v2165, %v2184
    %vm2190 = vc.u32 %v2165, %v2184
    %v2191 = vadd.s32 %v2187, 1
    %v2192 = vsel %vm2190, %v2191, %v2187
    %v2193 = vadd.s32 %v2188, %v2192
    %v2194 = vadd.s32 %v2193, 536870912
    %v2195 = vshrl.u32 %v2194, 30
    %v2196 = vshll.u32 %v2195, 30
    %v2197 = vsub.s32 %v2193, %v2196
    %vm2198 = vcmp.lt.s32.totalorder %v2197, 0
    %v2199 = vsub.s32 0, %v2197
    %v2200 = vsel %vm2198, %v2199, %v2197
    %v2201 = vclz %v2200
    %v2202 = vsub.s32 %v2201, 2
    %vm2203 = vcmp.gt.s32.totalorder 0, %v2202
    %v2204 = vsel %vm2203, 0, %v2202
    %v2205 = vsub.s32 32, %v2204
    %v2206 = vshll.u32 %v2197, %v2204
    %v2207 = vshrl.u32 %v2189, %v2205
    %v2208 = vor.u32 %v2206, %v2207
    %v2209 = vsub.s32 4294967266, %v2204
    %v2210 = vadd.s32 %v2209, 127
    %v2211 = vshll.u32 %v2210, 23
    %v2212 = vor.u32 4788187, %v2211
    %v2213 = vand.u32 2147483647, %v2212
    %v2215 = vcvt.s32.f32 %v2208
    %v2216 = vmul.f32 %v2215, %v2213
    %v2217 = vxor.u32 %v2216, 2147483648
    %v2218 = vsel %vm2097, %v2217, %v2216
    %v2219 = vsub.s32 4, %v2195
    %v2220 = vsel %vm2097, %v2219, %v2195
    %v2221 = vsel %vm2096, %v77, %v2218
    %v2222 = vsel %vm2096, 0, %v2220
    %v2223 = vmul.f32 %v2221, %v2221
    %v2224 = vmul.f32 %v2223, -0.001358992
    %v2225 = vadd.f32 %v2224, 0.041655596
    %v2226 = vmul.f32 %v2223, %v2225
    %v2227 = vadd.f32 %v2226, -0.4999988
    %v2228 = vmul.f32 %v2223, %v2227
    %v2229 = vadd.f32 1.0, %v2228
    %v2230 = vmul.f32 %v2221, %v2221
    %v2231 = vmul.f32 %v2230, -0.00019511016
    %v2232 = vadd.f32 %v2231, 0.008332121
    %v2233 = vmul.f32 %v2230, %v2232
    %v2234 = vadd.f32 %v2233, -0.16666654
    %v2235 = vmul.f32 %v2230, %v2234
    %v2236 = vadd.f32 %v2235, 1.0
    %v2237 = vmul.f32 %v2236, %v2221
    %vm2238 = vweird.f32 %v77
    %v2239 = vadd.s32 %v2222, 3
    %v2240 = vand.u32 %v2239, 3
    %vm2241 = vcmp.lt.s32.totalorder %v2240, 2
    %vm2242 = vcmp.eq.s32.totalorder %v2240, 0
    %v2243 = vxor.u32 %v2237, 2147483648
    %v2244 = vsel %vm2242, %v2229, %v2243
    %vm2245 = vcmp.eq.s32.totalorder %v2240, 2
    %v2246 = vxor.u32 %v2229, 2147483648
    %v2247 = vsel %vm2245, %v2246, %v2237
    %v2248 = vsel %vm2241, %v2244, %v2247
    %v2249 = vsel %vm2238, nan, %v2248
    %v2250 = vand.u32 2147483647, %v78
    %vm2251 = vcmp.le.f32.partialorder %v2250, 0.7853982
    %vm2252 = vcmp.lt.s32.totalorder %v78, 0
    %v2253 = vand.u32 %v78, 2139095040
    %v2254 = vshrl.u32 %v2253, 23
    %v2255 = vsub.s32 %v2254, 127
    %v2256 = vand.u32 2147483647, %v78
    %v2257 = vand.u32 %v2256, 8388607
    %v2258 = vor.u32 %v2257, 8388608
    %v2259 = vsub.s32 0, %v2258
    %v2260 = vadd.s32 %v2255, 1
    %vm2261 = vcmp.gt.s32.totalorder %v2260, 0
    %v2262 = vsel %vm2261, %v2260, 0
    %v2263 = vshrl.u32 %v2262, 5
    %v2264 = vand.u32 %v2262, 31
    %v2265 = vsub.s32 32, %v2264
    %v2266 = vshrl.u32 683565275, %v2265
    %v2267 = vshll.u32 683565275, %v2264
    %v2268 = vshrl.u32 2475754826, %v2265
    %v2269 = vor.u32 %v2267, %v2268
    %v2270 = vshll.u32 2475754826, %v2264
    %v2271 = vshrl.u32 2131351028, %v2265
    %v2272 = vor.u32 %v2270, %v2271
    %v2273 = vshll.u32 2131351028, %v2264
    %v2274 = vshrl.u32 2102212464, %v2265
    %v2275 = vor.u32 %v2273, %v2274
    %v2276 = vshll.u32 2102212464, %v2264
    %v2277 = vshrl.u32 920167782, %v2265
    %v2278 = vor.u32 %v2276, %v2277
    %v2279 = vshll.u32 920167782, %v2264
    %v2280 = vshrl.u32 1326507024, %v2265
    %v2281 = vor.u32 %v2279, %v2280
    %vm2282 = vcmp.lt.s32.totalorder %v2263, 1
    %vm2283 = vcmp.lt.s32.totalorder %v2263, 2
    %vm2284 = vcmp.lt.s32.totalorder %v2263, 3
    %vm2285 = vcmp.lt.s32.totalorder %v2263, 4
    %v2286 = vsel %vm2282, %v2266, %v2269
    %v2287 = vsel %vm2285, %v2275, 2102212464
    %v2288 = vsel %vm2284, %v2272, %v2287
    %v2289 = vsel %vm2283, %v2286, %v2288
    %v2290 = vsel %vm2282, %v2269, %v2272
    %v2291 = vsel %vm2285, %v2278, 920167782
    %v2292 = vsel %vm2284, %v2275, %v2291
    %v2293 = vsel %vm2283, %v2290, %v2292
    %v2294 = vsel %vm2282, %v2272, %v2275
    %v2295 = vsel %vm2285, %v2281, 1326507024
    %v2296 = vsel %vm2284, %v2278, %v2295
    %v2297 = vsel %vm2283, %v2294, %v2296
    %v2298 = vshll.u32 %v2258, 8
    %v2299 = vand.u32 %v2298, 65535
    %v2300 = vshrl.u32 %v2298, 16
    %v2301 = vand.u32 %v2297, 65535
    %v2302 = vshrl.u32 %v2297, 16
    %v2303 = vmul.u32 %v2299, %v2301
    %v2304 = vmul.u32 %v2299, %v2302
    %v2305 = vmul.u32 %v2300, %v2301
    %v2306 = vmul.u32 %v2300, %v2302
    %v2307 = vshll.u32 %v2304, 16
    %v2308 = vshrl.u32 %v2304, 16
    %v2309 = vshll.u32 %v2305, 16
    %v2310 = vshrl.u32 %v2305, 16
    %vm2311 = vc.u32 %v2303, %v2307
    %v2312 = vsel %vm2311, 1, 0
    %v2313 = vadd.s32 %v2303, %v2307
    %v2314 = vadd.s32 %v2306, %v2312
    %vm2315 = vc.u32 %v2313, %v2309
    %v2316 = vsel %vm2315, 1, 0
    %v2317 = vadd.s32 %v2313, %v2309
    %v2318 = vadd.s32 %v2314, %v2316
    %v2319 = vadd.s32 %v2318, %v2308
    %v2320 = vadd.s32 %v2319, %v2310
    %v2321 = vand.u32 %v2298, 65535
    %v2322 = vshrl.u32 %v2298, 16
    %v2323 = vand.u32 %v2293, 65535
    %v2324 = vshrl.u32 %v2293, 16
    %v2325 = vmul.u32 %v2321, %v2323
    %v2326 = vmul.u32 %v2321, %v2324
    %v2327 = vmul.u32 %v2322, %v2323
    %v2328 = vmul.u32 %v2322, %v2324
    %v2329 = vshll.u32 %v2326, 16
    %v2330 = vshrl.u32 %v2326, 16
    %v2331 = vshll.u32 %v2327, 16
    %v2332 = vshrl.u32 %v2327, 16
    %vm2333 = vc.u32 %v2325, %v2329
    %v2334 = vsel %vm2333, 1, 0
    %v2335 = vadd.s32 %v2325, %v2329
    %v2336 = vadd.s32 %v2328, %v2334
    %vm2337 = vc.u32 %v2335, %v2331
    %v2338 = vsel %vm2337, 1, 0
    %v2339 = vadd.s32 %v2335, %v2331
    %v2340 = vadd.s32 %v2336, %v2338
    %v2341 = vadd.s32 %v2340, %v2330
    %v2342 = vadd.s32 %v2341, %v2332
    %v2343 = vmul.u32 %v2298, %v2289
    %v2344 = vadd.s32 %v2320, %v2339
    %vm2345 = vc.u32 %v2320, %v2339
    %v2346 = vadd.s32 %v2342, 1
    %v2347 = vsel %vm2345, %v2346, %v2342
    %v2348 = vadd.s32 %v2343, %v2347
    %v2349 = vadd.s32 %v2348, 536870912
    %v2350 = vshrl.u32 %v2349, 30
    %v2351 = vshll.u32 %v2350, 30
    %v2352 = vsub.s32 %v2348, %v2351
    %vm2353 = vcmp.lt.s32.totalorder %v2352, 0
    %v2354 = vsub.s32 0, %v2352
    %v2355 = vsel %vm2353, %v2354, %v2352
    %v2356 = vclz %v2355
    %v2357 = vsub.s32 %v2356, 2
    %vm2358 = vcmp.gt.s32.totalorder 0, %v2357
    %v2359 = vsel %vm2358, 0, %v2357
    %v2360 = vsub.s32 32, %v2359
    %v2361 = vshll.u32 %v2352, %v2359
    %v2362 = vshrl.u32 %v2344, %v2360
    %v2363 = vor.u32 %v2361, %v2362
    %v2364 = vsub.s32 4294967266, %v2359
    %v2365 = vadd.s32 %v2364, 127
    %v2366 = vshll.u32 %v2365, 23
    %v2367 = vor.u32 4788187, %v2366
    %v2368 = vand.u32 2147483647, %v2367
    %v2370 = vcvt.s32.f32 %v2363
    %v2371 = vmul.f32 %v2370, %v2368
    %v2372 = vxor.u32 %v2371, 2147483648
    %v2373 = vsel %vm2252, %v2372, %v2371
    %v2374 = vsub.s32 4, %v2350
    %v2375 = vsel %vm2252, %v2374, %v2350
    %v2376 = vsel %vm2251, %v78, %v2373
    %v2377 = vsel %vm2251, 0, %v2375
    %v2378 = vmul.f32 %v2376, %v2376
    %v2379 = vmul.f32 %v2378, -0.001358992
    %v2380 = vadd.f32 %v2379, 0.041655596
    %v2381 = vmul.f32 %v2378, %v2380
    %v2382 = vadd.f32 %v2381, -0.4999988
    %v2383 = vmul.f32 %v2378, %v2382
    %v2384 = vadd.f32 1.0, %v2383
    %v2385 = vmul.f32 %v2376, %v2376
    %v2386 = vmul.f32 %v2385, -0.00019511016
    %v2387 = vadd.f32 %v2386, 0.008332121
    %v2388 = vmul.f32 %v2385, %v2387
    %v2389 = vadd.f32 %v2388, -0.16666654
    %v2390 = vmul.f32 %v2385, %v2389
    %v2391 = vadd.f32 %v2390, 1.0
    %v2392 = vmul.f32 %v2391, %v2376
    %vm2393 = vweird.f32 %v78
    %v2394 = vadd.s32 %v2377, 3
    %v2395 = vand.u32 %v2394, 3
    %vm2396 = vcmp.lt.s32.totalorder %v2395, 2
    %vm2397 = vcmp.eq.s32.totalorder %v2395, 0
    %v2398 = vxor.u32 %v2392, 2147483648
    %v2399 = vsel %vm2397, %v2384, %v2398
    %vm2400 = vcmp.eq.s32.totalorder %v2395, 2
    %v2401 = vxor.u32 %v2384, 2147483648
    %v2402 = vsel %vm2400, %v2401, %v2392
    %v2403 = vsel %vm2396, %v2399, %v2402
    %v2404 = vsel %vm2393, nan, %v2403
    %v2405 = vand.u32 2147483647, %v79
    %vm2406 = vcmp.le.f32.partialorder %v2405, 0.7853982
    %vm2407 = vcmp.lt.s32.totalorder %v79, 0
    %v2408 = vand.u32 %v79, 2139095040
    %v2409 = vshrl.u32 %v2408, 23
    %v2410 = vsub.s32 %v2409, 127
    %v2411 = vand.u32 2147483647, %v79
    %v2412 = vand.u32 %v2411, 8388607
    %v2413 = vor.u32 %v2412, 8388608
    %v2414 = vsub.s32 0, %v2413
    %v2415 = vadd.s32 %v2410, 1
    %vm2416 = vcmp.gt.s32.totalorder %v2415, 0
    %v2417 = vsel %vm2416, %v2415, 0
    %v2418 = vshrl.u32 %v2417, 5
    %v2419 = vand.u32 %v2417, 31
    %v2420 = vsub.s32 32, %v2419
    %v2421 = vshrl.u32 683565275, %v2420
    %v2422 = vshll.u32 683565275, %v2419
    %v2423 = vshrl.u32 2475754826, %v2420
    %v2424 = vor.u32 %v2422, %v2423
    %v2425 = vshll.u32 2475754826, %v2419
    %v2426 = vshrl.u32 2131351028, %v2420
    %v2427 = vor.u32 %v2425, %v2426
    %v2428 = vshll.u32 2131351028, %v2419
    %v2429 = vshrl.u32 2102212464, %v2420
    %v2430 = vor.u32 %v2428, %v2429
    %v2431 = vshll.u32 2102212464, %v2419
    %v2432 = vshrl.u32 920167782, %v2420
    %v2433 = vor.u32 %v2431, %v2432
    %v2434 = vshll.u32 920167782, %v2419
    %v2435 = vshrl.u32 1326507024, %v2420
    %v2436 = vor.u32 %v2434, %v2435
    %vm2437 = vcmp.lt.s32.totalorder %v2418, 1
    %vm2438 = vcmp.lt.s32.totalorder %v2418, 2
    %vm2439 = vcmp.lt.s32.totalorder %v2418, 3
    %vm2440 = vcmp.lt.s32.totalorder %v2418, 4
    %v2441 = vsel %vm2437, %v2421, %v2424
    %v2442 = vsel %vm2440, %v2430, 2102212464
    %v2443 = vsel %vm2439, %v2427, %v2442
    %v2444 = vsel %vm2438, %v2441, %v2443
    %v2445 = vsel %vm2437, %v2424, %v2427
    %v2446 = vsel %vm2440, %v2433, 920167782
    %v2447 = vsel %vm2439, %v2430, %v2446
    %v2448 = vsel %vm2438, %v2445, %v2447
    %v2449 = vsel %vm2437, %v2427, %v2430
    %v2450 = vsel %vm2440, %v2436, 1326507024
    %v2451 = vsel %vm2439, %v2433, %v2450
    %v2452 = vsel %vm2438, %v2449, %v2451
    %v2453 = vshll.u32 %v2413, 8
    %v2454 = vand.u32 %v2453, 65535
    %v2455 = vshrl.u32 %v2453, 16
    %v2456 = vand.u32 %v2452, 65535
    %v2457 = vshrl.u32 %v2452, 16
    %v2458 = vmul.u32 %v2454, %v2456
    %v2459 = vmul.u32 %v2454, %v2457
    %v2460 = vmul.u32 %v2455, %v2456
    %v2461 = vmul.u32 %v2455, %v2457
    %v2462 = vshll.u32 %v2459, 16
    %v2463 = vshrl.u32 %v2459, 16
    %v2464 = vshll.u32 %v2460, 16
    %v2465 = vshrl.u32 %v2460, 16
    %vm2466 = vc.u32 %v2458, %v2462
    %v2467 = vsel %vm2466, 1, 0
    %v2468 = vadd.s32 %v2458, %v2462
    %v2469 = vadd.s32 %v2461, %v2467
    %vm2470 = vc.u32 %v2468, %v2464
    %v2471 = vsel %vm2470, 1, 0
    %v2472 = vadd.s32 %v2468, %v2464
    %v2473 = vadd.s32 %v2469, %v2471
    %v2474 = vadd.s32 %v2473, %v2463
    %v2475 = vadd.s32 %v2474, %v2465
    %v2476 = vand.u32 %v2453, 65535
    %v2477 = vshrl.u32 %v2453, 16
    %v2478 = vand.u32 %v2448, 65535
    %v2479 = vshrl.u32 %v2448, 16
    %v2480 = vmul.u32 %v2476, %v2478
    %v2481 = vmul.u32 %v2476, %v2479
    %v2482 = vmul.u32 %v2477, %v2478
    %v2483 = vmul.u32 %v2477, %v2479
    %v2484 = vshll.u32 %v2481, 16
    %v2485 = vshrl.u32 %v2481, 16
    %v2486 = vshll.u32 %v2482, 16
    %v2487 = vshrl.u32 %v2482, 16
    %vm2488 = vc.u32 %v2480, %v2484
    %v2489 = vsel %vm2488, 1, 0
    %v2490 = vadd.s32 %v2480, %v2484
    %v2491 = vadd.s32 %v2483, %v2489
    %vm2492 = vc.u32 %v2490, %v2486
    %v2493 = vsel %vm2492, 1, 0
    %v2494 = vadd.s32 %v2490, %v2486
    %v2495 = vadd.s32 %v2491, %v2493
    %v2496 = vadd.s32 %v2495, %v2485
    %v2497 = vadd.s32 %v2496, %v2487
    %v2498 = vmul.u32 %v2453, %v2444
    %v2499 = vadd.s32 %v2475, %v2494
    %vm2500 = vc.u32 %v2475, %v2494
    %v2501 = vadd.s32 %v2497, 1
    %v2502 = vsel %vm2500, %v2501, %v2497
    %v2503 = vadd.s32 %v2498, %v2502
    %v2504 = vadd.s32 %v2503, 536870912
    %v2505 = vshrl.u32 %v2504, 30
    %v2506 = vshll.u32 %v2505, 30
    %v2507 = vsub.s32 %v2503, %v2506
    %vm2508 = vcmp.lt.s32.totalorder %v2507, 0
    %v2509 = vsub.s32 0, %v2507
    %v2510 = vsel %vm2508, %v2509, %v2507
    %v2511 = vclz %v2510
    %v2512 = vsub.s32 %v2511, 2
    %vm2513 = vcmp.gt.s32.totalorder 0, %v2512
    %v2514 = vsel %vm2513, 0, %v2512
    %v2515 = vsub.s32 32, %v2514
    %v2516 = vshll.u32 %v2507, %v2514
    %v2517 = vshrl.u32 %v2499, %v2515
    %v2518 = vor.u32 %v2516, %v2517
    %v2519 = vsub.s32 4294967266, %v2514
    %v2520 = vadd.s32 %v2519, 127
    %v2521 = vshll.u32 %v2520, 23
    %v2522 = vor.u32 4788187, %v2521
    %v2523 = vand.u32 2147483647, %v2522
    %v2525 = vcvt.s32.f32 %v2518
    %v2526 = vmul.f32 %v2525, %v2523
    %v2527 = vxor.u32 %v2526, 2147483648
    %v2528 = vsel %vm2407, %v2527, %v2526
    %v2529 = vsub.s32 4, %v2505
    %v2530 = vsel %vm2407, %v2529, %v2505
    %v2531 = vsel %vm2406, %v79, %v2528
    %v2532 = vsel %vm2406, 0, %v2530
    %v2533 = vmul.f32 %v2531, %v2531
    %v2534 = vmul.f32 %v2533, -0.001358992
    %v2535 = vadd.f32 %v2534, 0.041655596
    %v2536 = vmul.f32 %v2533, %v2535
    %v2537 = vadd.f32 %v2536, -0.4999988
    %v2538 = vmul.f32 %v2533, %v2537
    %v2539 = vadd.f32 1.0, %v2538
    %v2540 = vmul.f32 %v2531, %v2531
    %v2541 = vmul.f32 %v2540, -0.00019511016
    %v2542 = vadd.f32 %v2541, 0.008332121
    %v2543 = vmul.f32 %v2540, %v2542
    %v2544 = vadd.f32 %v2543, -0.16666654
    %v2545 = vmul.f32 %v2540, %v2544
    %v2546 = vadd.f32 %v2545, 1.0
    %v2547 = vmul.f32 %v2546, %v2531
    %vm2548 = vweird.f32 %v79
    %v2549 = vadd.s32 %v2532, 3
    %v2550 = vand.u32 %v2549, 3
    %vm2551 = vcmp.lt.s32.totalorder %v2550, 2
    %vm2552 = vcmp.eq.s32.totalorder %v2550, 0
    %v2553 = vxor.u32 %v2547, 2147483648
    %v2554 = vsel %vm2552, %v2539, %v2553
    %vm2555 = vcmp.eq.s32.totalorder %v2550, 2
    %v2556 = vxor.u32 %v2539, 2147483648
    %v2557 = vsel %vm2555, %v2556, %v2547
    %v2558 = vsel %vm2551, %v2554, %v2557
    %v2559 = vsel %vm2548, nan, %v2558
    %2560 = vst [vmem:[#allocation6] sm:$0xff] %v1474
    %2561 = vst [vmem:[#allocation6 + $0x8] sm:$0xff] %v1629
    %2562 = vst [vmem:[#allocation6 + $0x10] sm:$0xff] %v1784
    %2563 = vst [vmem:[#allocation6 + $0x18] sm:$0xff] %v1939
    %2564 = vst [vmem:[#allocation6 + $0x20] sm:$0xff] %v2094
    %2565 = vst [vmem:[#allocation6 + $0x28] sm:$0xff] %v2249
    %2566 = vst [vmem:[#allocation6 + $0x30] sm:$0xff] %v2404
    %2567 = vst [vmem:[#allocation6 + $0x38] sm:$0xff] %v2559
    // Predicated region
    $region10: #{tpu_custom_call.1} parent=1 // pred_check
      _
    $region11: #{tpu_custom_call.1} parent=1 // pred_check_branch
      %2569 = sbr.rel (0) target = $region13
    $region12: #{tpu_custom_call.1} parent=1 // pred_region
      %2571 = vsyncadd [#allocation4], 0
      %s2572 = sshll.u32 [#allocation5], 4
      %s2573 = int_to_ptr.vmem [resolvable:$true] %s2572
      %s2574 = sshll.u32 %s1, 4
      %s2575 = int_to_ptr.hbm [resolvable:$true] %s2574
      %2580 = dma.vmem_to_hbm [thread:$0]  %s2573, 1024, %s2575, [#allocation4], 128, 128, 8
    $region13: #{tpu_custom_call.1} parent=1 // pred_fallthru
      _
    // Predicated region
    $region14: #{tpu_custom_call.1} parent=1 // pred_check
      _
    $region15: #{tpu_custom_call.1} parent=1 // pred_check_branch
      %2582 = sbr.rel (0) target = $region17
    $region16: #{tpu_custom_call.1} parent=1 // pred_region
      %2584 = vsyncadd [#allocation7], 0
      %s2585 = sshll.u32 [#allocation6], 4
      %s2586 = int_to_ptr.vmem [resolvable:$true] %s2585
      %s2587 = sshll.u32 %s2, 4
      %s2588 = int_to_ptr.hbm [resolvable:$true] %s2587
      %2593 = dma.vmem_to_hbm [thread:$0]  %s2586, 1024, %s2588, [#allocation7], 128, 128, 8
    $region17: #{tpu_custom_call.1} parent=1 // pred_fallthru
      _
    // Predicated region
    $region18: #{tpu_custom_call.1} parent=1 // pred_check
      _
    $region19: #{tpu_custom_call.1} parent=1 // pred_check_branch
      %2595 = sbr.rel (0) target = $region21
    $region20: #{tpu_custom_call.1} parent=1 // pred_region
      %2597 = dma.done [#allocation4], 1024
    $region21: #{tpu_custom_call.1} parent=1 // pred_fallthru
      _
    // Predicated region
    $region22: #{tpu_custom_call.1} parent=1 // pred_check
      _
    $region23: #{tpu_custom_call.1} parent=1 // pred_check_branch
      %2599 = sbr.rel (0) target = $region25
    $region24: #{tpu_custom_call.1} parent=1 // pred_region
      %2601 = dma.done [#allocation7], 1024
    $region25: #{tpu_custom_call.1} parent=1 // pred_fallthru
      _
    %2602 = vsyncpa [#allocation3], 1
    %2603 = vsyncpa [#allocation4], 1
    %2604 = vsyncpa [#allocation7], 1

</llo_original>
